<compile_context>
chip_gen: v7x
topology: tpu7x:2x2x1
jax: 0.10.0
libtpu: 0.0.40
codegen_flags: <defaults>
</compile_context>

<pallas_src>
import functools

import jax
import jax.numpy as jnp
from jax import lax
from jax.experimental import pallas as pl
from jax.experimental.pallas import tpu as pltpu

LANE = 128


# ------------------------------ helpers ------------------------------------ #
def _round_up(v, m):
    return ((v + m - 1) // m) * m


def _pad2(x, rows, cols):
    r, c = x.shape
    return jnp.pad(x, ((0, rows - r), (0, cols - c)))


# --------------------- fused multi-layer GCN kernel ------------------------ #
def _fused_gcn_kernel(a_ref, x_ref, w_ref, b_ref, o_ref, h_ref):
    # grid axis 0 = layer index. A_norm (a_ref) and the running activation (h_ref scratch)
    # stay resident in VMEM across layers; only W / b / the per-layer output block change.
    layer = pl.program_id(0)

    @pl.when(layer == 0)
    def _():
        h_ref[...] = x_ref[...]          # bf16 copy of the (padded) input features

    h = h_ref[...]                       # (N_pad, F_pad) bf16
    # Feature transform first: keeps the intermediate at N_pad x F_pad and is computed
    # exactly once per layer. f32 accumulation on the MXU.
    hw = jnp.dot(h, w_ref[0], preferred_element_type=jnp.float32)
    # Message passing: A_norm @ (H W), bf16 operands, f32 accumulation.
    agg = jnp.dot(a_ref[...], hw.astype(jnp.bfloat16),
                  preferred_element_type=jnp.float32)
    h_new = agg + b_ref[0]               # bias broadcast (1, F_pad) f32

    h_ref[...] = h_new.astype(jnp.bfloat16)      # activation for the next layer
    o_ref[0] = h_new.astype(o_ref.dtype)         # per-layer output (needed for the concat)


def fused_gcn_stack(a_norm, x, layer_params):
    """Run a stack of GCNConv layers (no nonlinearity) in a single pallas_call.

    Returns the activation of every layer (at true, un-padded sizes)."""
    n = x.shape[0]
    num_layers = len(layer_params)
    dims = [x.shape[1]] + [w.shape[1] for w, _ in layer_params]
    f_pad = _round_up(max(dims), LANE)
    n_pad = _round_up(n, LANE)

    a_p = _pad2(a_norm, n_pad, n_pad).astype(jnp.bfloat16)
    x_p = _pad2(x, n_pad, f_pad).astype(jnp.bfloat16)
    w_stack = jnp.stack([_pad2(w, f_pad, f_pad) for w, _ in layer_params]
                        ).astype(jnp.bfloat16)                      # (L, F_pad, F_pad)
    b_stack = jnp.stack([jnp.pad(b, (0, f_pad - b.shape[0])).reshape(1, f_pad)
                         for _, b in layer_params]).astype(jnp.float32)  # (L, 1, F_pad)

    out = pl.pallas_call(
        _fused_gcn_kernel,
        out_shape=jax.ShapeDtypeStruct((num_layers, n_pad, f_pad), jnp.float32),
        grid=(num_layers,),
        in_specs=[
            # constant block index -> A_norm and X are DMA'd into VMEM once and stay resident
            pl.BlockSpec((n_pad, n_pad), lambda l: (0, 0)),
            pl.BlockSpec((n_pad, f_pad), lambda l: (0, 0)),
            # per-layer weight / bias slabs
            pl.BlockSpec((1, f_pad, f_pad), lambda l: (l, 0, 0)),
            pl.BlockSpec((1, 1, f_pad), lambda l: (l, 0, 0)),
        ],
        out_specs=pl.BlockSpec((1, n_pad, f_pad), lambda l: (l, 0, 0)),
        scratch_shapes=[pltpu.VMEM((n_pad, f_pad), jnp.bfloat16)],   # running activation H
        compiler_params=pltpu.CompilerParams(
            dimension_semantics=("arbitrary",),      # layer axis is a sequential dependency
            # resident-A path: fine for small/medium N; raise per generation (<=128 MiB on
            # v5e/v6e, <=64 MiB on v7x) for larger graphs, or switch to the tiled fallback.
            vmem_limit_bytes=32 * 1024 * 1024,
        ),
    )(a_p, x_p, w_stack, b_stack)

    return [out[l, :n, :dims[l + 1]] for l in range(num_layers)]


# --------------------------- dense linear kernel --------------------------- #
def _linear_kernel(x_ref, w_ref, b_ref, o_ref, *, apply_relu):
    y = jnp.dot(x_ref[...], w_ref[...], preferred_element_type=jnp.float32) + b_ref[...]
    if apply_relu:
        y = jnp.maximum(y, 0.0)
    o_ref[...] = y.astype(o_ref.dtype)


def pallas_linear(x, w, b, apply_relu=False):
    """x @ w + b (optionally ReLU), on 128-padded lane-dense shapes."""
    n, f_in = x.shape
    f_out = w.shape[1]
    n_pad = _round_up(n, LANE)
    fi_pad = _round_up(f_in, LANE)
    fo_pad = _round_up(f_out, LANE)
    out = pl.pallas_call(
        functools.partial(_linear_kernel, apply_relu=apply_relu),
        out_shape=jax.ShapeDtypeStruct((n_pad, fo_pad), jnp.float32),
    )(_pad2(x, n_pad, fi_pad),
      _pad2(w, fi_pad, fo_pad),
      jnp.pad(b, (0, fo_pad - f_out)).reshape(1, fo_pad))
    return out[:n, :f_out]


# --------------------- inner-product decoder (forward_all) ----------------- #
def _inner_product_kernel(z_ref, o_ref):
    z = z_ref[...]
    logits = lax.dot_general(z, z, dimension_numbers=(((1,), (1,)), ((), ())),
                             preferred_element_type=jnp.float32)     # Z @ Z.T
    o_ref[...] = jax.nn.sigmoid(logits)


def inner_product_decode_all(z):
    n, d = z.shape
    n_pad = _round_up(n, LANE)
    d_pad = _round_up(d, LANE)
    out = pl.pallas_call(
        _inner_product_kernel,
        out_shape=jax.ShapeDtypeStruct((n_pad, n_pad), jnp.float32),
    )(_pad2(z, n_pad, d_pad))
    return out[:n, :n]


# ------------------------------- JAX glue ----------------------------------- #
def build_normalized_adjacency(edge_index, num_nodes):
    """Dense D^{-1/2} (A + remaining self-loops) D^{-1/2}, matching PyG gcn_norm."""
    # TODO(synk): dense O(N^2) build with scatter-add; use a sparse/segment_sum path for big N.
    src, dst = edge_index[0], edge_index[1]
    a = jnp.zeros((num_nodes, num_nodes), dtype=jnp.float32)
    a = a.at[dst, src].add(1.0)                              # A[dst, src] = edge weight
    # add_remaining_self_loops: only add a unit self-loop where one is missing
    diag = jnp.diagonal(a)
    a = a + jnp.diag(jnp.where(diag == 0.0, 1.0, 0.0))
    deg = jnp.sum(a, axis=1)                                 # in-degree (incl. self-loop)
    d_inv_sqrt = jnp.where(deg > 0, 1.0 / jnp.sqrt(deg), 0.0)
    return a * d_inv_sqrt[:, None] * d_inv_sqrt[None, :]


def _glorot(key, fan_in, fan_out):
    limit = jnp.sqrt(6.0 / (fan_in + fan_out))
    return jax.random.uniform(key, (fan_in, fan_out), jnp.float32,
                              minval=-limit, maxval=limit)


def init_params(key, in_self, in_agg, out_ch):
    """Deterministic init mirroring the layers MVGE2.forward actually uses."""
    ks = jax.random.split(key, 5)
    p = {
        "w_in_self": _glorot(ks[0], in_self, 2 * out_ch),
        "b_in_self": jnp.zeros((2 * out_ch,), jnp.float32),
        "w_out_self": _glorot(ks[1], in_self + 2 * out_ch, out_ch),
        "b_out_self": jnp.zeros((out_ch,), jnp.float32),
        "w_gcn1": _glorot(ks[2], in_agg, 2 * out_ch),
        "b_gcn1": jnp.zeros((2 * out_ch,), jnp.float32),
        "w_gcn2": _glorot(ks[3], 2 * out_ch, out_ch),
        "b_gcn2": jnp.zeros((out_ch,), jnp.float32),
        "w_out": _glorot(ks[4], in_agg + 3 * out_ch, out_ch),
        "b_out": jnp.zeros((out_ch,), jnp.float32),
    }
    # gcn3 / decoder_self / decoder_neighbor exist in the module but are unused by forward().
    return p


@functools.partial(jax.jit, static_argnames=("num_nodes",))
def mvge2_forward(params, x_self, x_neighbor, edge_index, num_nodes):
    a_norm = build_normalized_adjacency(edge_index, num_nodes)

    # --- encoder, self branch (small dense linears) ---
    l1 = pallas_linear(x_self, params["w_in_self"], params["b_in_self"], apply_relu=True)
    l1 = jnp.concatenate([x_self, l1], axis=1)
    z1 = pallas_linear(l1, params["w_out_self"], params["b_out_self"])

    # --- encoder, neighbor branch: fused 2-layer GCN stack (one pallas_call) ---
    g1, g2 = fused_gcn_stack(
        a_norm, x_neighbor,
        [(params["w_gcn1"], params["b_gcn1"]),
         (params["w_gcn2"], params["b_gcn2"])])
    x2 = jnp.concatenate([x_neighbor, g1, g2], axis=1)
    z2 = pallas_linear(x2, params["w_out"], params["b_out"])

    # --- decoder.forward_all on Z = concat(z1, z2) ---
    z = jnp.concatenate([z1, z2], axis=1)
    return inner_product_decode_all(z)


# -------------------------------- driver ------------------------------------ #
if __name__ == "__main__":
    key = jax.random.PRNGKey(0)
    num_nodes, in_self, in_agg, out_ch, num_edges = 16, 8, 8, 16, 40

    keys = jax.random.split(key, 5)
    x_self = jax.random.normal(keys[0], (num_nodes, in_self), jnp.float32)
    x_neighbor = jax.random.normal(keys[1], (num_nodes, in_agg), jnp.float32)
    src = jax.random.randint(keys[2], (num_edges,), 0, num_nodes)
    dst = jax.random.randint(keys[3], (num_edges,), 0, num_nodes)
    edge_index = jnp.stack([src, dst], axis=0).astype(jnp.int32)

    params = init_params(keys[4], in_self, in_agg, out_ch)

    adj_pred = mvge2_forward(params, x_self, x_neighbor, edge_index, num_nodes)
    jax.block_until_ready(adj_pred)

    assert adj_pred.shape == (num_nodes, num_nodes)
    assert adj_pred.dtype == jnp.float32
    assert bool(jnp.all(jnp.isfinite(adj_pred)))
    assert bool(jnp.all((adj_pred >= 0.0) & (adj_pred <= 1.0)))
    print("KERNEL_OK")
</pallas_src>

<mosaic_0001>
module attributes {stable_mosaic.version = 11 : i64} {
  func.func @_fused_gcn_kernel(%arg0: i32, %arg1: memref<128x128xbf16, #tpu.memory_space<vmem>>, %arg2: memref<128x128xbf16, #tpu.memory_space<vmem>>, %arg3: memref<1x128x128xbf16, #tpu.memory_space<vmem>>, %arg4: memref<1x1x128xf32, #tpu.memory_space<vmem>>, %arg5: memref<1x128x128xf32, #tpu.memory_space<vmem>>, %arg6: memref<128x128xbf16, #tpu.memory_space<vmem>>) attributes {dimension_semantics = [#tpu.dimension_semantics<arbitrary>], iteration_bounds = array<i64: 2>, scalar_prefetch = 0 : i64, scratch_operands = 1 : i64, tpu.core_type = #tpu.core_type<tc>, window_params = [{pipeline_mode = #tpu.pipeline_mode<synchronous>, transform_indices = @transform_0, window_bounds = array<i64: 128, 128>}, {pipeline_mode = #tpu.pipeline_mode<synchronous>, transform_indices = @transform_1, window_bounds = array<i64: 128, 128>}, {transform_indices = @transform_2, window_bounds = array<i64: 1, 128, 128>}, {transform_indices = @transform_3, window_bounds = array<i64: 1, 1, 128>}, {transform_indices = @transform_4, window_bounds = array<i64: 1, 128, 128>}]} {
    %c0_i32 = arith.constant 0 : i32
    %0 = arith.cmpi eq, %arg0, %c0_i32 : i32
    %1 = arith.extui %0 : i1 to i32
    %c0_i32_0 = arith.constant 0 : i32
    %2 = arith.cmpi ne, %1, %c0_i32_0 : i32
    scf.if %2 {
      %c0_16 = arith.constant 0 : index
      %c0_17 = arith.constant 0 : index
      %19 = vector.load %arg2[%c0_16, %c0_17] : memref<128x128xbf16, #tpu.memory_space<vmem>>, vector<128x128xbf16>
      %c0_18 = arith.constant 0 : index
      %c0_19 = arith.constant 0 : index
      %20 = vector.load %arg6[%c0_18, %c0_19] : memref<128x128xbf16, #tpu.memory_space<vmem>>, vector<128x128xbf16>
      tpu.vector_store %arg6[%c0_18, %c0_19], %19 {strides = array<i32>} : memref<128x128xbf16, #tpu.memory_space<vmem>>, vector<128x128xbf16>,
    } else {
    }
    %c0 = arith.constant 0 : index
    %c0_1 = arith.constant 0 : index
    %3 = vector.load %arg6[%c0, %c0_1] : memref<128x128xbf16, #tpu.memory_space<vmem>>, vector<128x128xbf16>
    %c0_2 = arith.constant 0 : index
    %c0_3 = arith.constant 0 : index
    %c0_4 = arith.constant 0 : index
    %4 = vector.load %arg3[%c0_2, %c0_3, %c0_4] : memref<1x128x128xbf16, #tpu.memory_space<vmem>>, vector<1x128x128xbf16>
    %5 = vector.shape_cast %4 : vector<1x128x128xbf16> to vector<128x128xbf16>
    %cst = arith.constant dense<0.000000e+00> : vector<128x128xf32>
    %6 = tpu.matmul %3, %5, %cst {dimension_numbers = #tpu.dot_dimension_numbers<[1], [0], [0], [1], [0, 0, 1, 1], [], []>} : vector<128x128xbf16>, vector<128x128xbf16>, vector<128x128xf32> -> vector<128x128xf32>
    %c0_5 = arith.constant 0 : index
    %c0_6 = arith.constant 0 : index
    %7 = vector.load %arg1[%c0_5, %c0_6] : memref<128x128xbf16, #tpu.memory_space<vmem>>, vector<128x128xbf16>
    %8 = arith.truncf %6 : vector<128x128xf32> to vector<128x128xbf16>
    %cst_7 = arith.constant dense<0.000000e+00> : vector<128x128xf32>
    %9 = tpu.matmul %7, %8, %cst_7 {dimension_numbers = #tpu.dot_dimension_numbers<[1], [0], [0], [1], [0, 0, 1, 1], [], []>} : vector<128x128xbf16>, vector<128x128xbf16>, vector<128x128xf32> -> vector<128x128xf32>
    %c0_8 = arith.constant 0 : index
    %c0_9 = arith.constant 0 : index
    %c0_10 = arith.constant 0 : index
    %10 = vector.load %arg4[%c0_8, %c0_9, %c0_10] : memref<1x1x128xf32, #tpu.memory_space<vmem>>, vector<1x1x128xf32>
    %11 = vector.shape_cast %10 : vector<1x1x128xf32> to vector<1x128xf32>
    %12 = vector.broadcast %11 : vector<1x128xf32> to vector<128x128xf32>
    %13 = arith.addf %9, %12 : vector<128x128xf32>
    %14 = arith.truncf %13 : vector<128x128xf32> to vector<128x128xbf16>
    %c0_11 = arith.constant 0 : index
    %c0_12 = arith.constant 0 : index
    %15 = vector.load %arg6[%c0_11, %c0_12] : memref<128x128xbf16, #tpu.memory_space<vmem>>, vector<128x128xbf16>
    tpu.vector_store %arg6[%c0_11, %c0_12], %14 {strides = array<i32>} : memref<128x128xbf16, #tpu.memory_space<vmem>>, vector<128x128xbf16>,
    %c0_13 = arith.constant 0 : index
    %c0_14 = arith.constant 0 : index
    %c0_15 = arith.constant 0 : index
    %16 = vector.load %arg5[%c0_13, %c0_14, %c0_15] : memref<1x128x128xf32, #tpu.memory_space<vmem>>, vector<1x128x128xf32>
    %17 = vector.shape_cast %16 : vector<1x128x128xf32> to vector<128x128xf32>
    %18 = vector.shape_cast %13 : vector<128x128xf32> to vector<1x128x128xf32>
    tpu.vector_store %arg5[%c0_13, %c0_14, %c0_15], %18 {strides = array<i32>} : memref<1x128x128xf32, #tpu.memory_space<vmem>>, vector<1x128x128xf32>,
    return
  }
  func.func @transform_0(%arg0: i32) -> (i32, i32) {
    %c0_i32 = arith.constant 0 : i32
    %c0_i32_0 = arith.constant 0 : i32
    %c0_i32_1 = arith.constant 0 : i32
    return %c0_i32, %c0_i32_0 : i32, i32
  }
  func.func @transform_1(%arg0: i32) -> (i32, i32) {
    %c0_i32 = arith.constant 0 : i32
    %c0_i32_0 = arith.constant 0 : i32
    %c0_i32_1 = arith.constant 0 : i32
    return %c0_i32, %c0_i32_0 : i32, i32
  }
  func.func @transform_2(%arg0: i32) -> (i32, i32, i32) {
    %c0_i32 = arith.constant 0 : i32
    %c0_i32_0 = arith.constant 0 : i32
    %c0_i32_1 = arith.constant 0 : i32
    return %arg0, %c0_i32, %c0_i32_0 : i32, i32, i32
  }
  func.func @transform_3(%arg0: i32) -> (i32, i32, i32) {
    %c0_i32 = arith.constant 0 : i32
    %c0_i32_0 = arith.constant 0 : i32
    %c0_i32_1 = arith.constant 0 : i32
    return %arg0, %c0_i32, %c0_i32_0 : i32, i32, i32
  }
  func.func @transform_4(%arg0: i32) -> (i32, i32, i32) {
    %c0_i32 = arith.constant 0 : i32
    %c0_i32_0 = arith.constant 0 : i32
    %c0_i32_1 = arith.constant 0 : i32
    return %arg0, %c0_i32, %c0_i32_0 : i32, i32, i32
  }
}

module attributes {stable_mosaic.version = 11 : i64} {
  func.func @_linear_kernel(%arg0: memref<128x128xf32, #tpu.memory_space<vmem>>, %arg1: memref<128x128xf32, #tpu.memory_space<vmem>>, %arg2: memref<1x128xf32, #tpu.memory_space<vmem>>, %arg3: memref<128x128xf32, #tpu.memory_space<vmem>>) attributes {dimension_semantics = [], scalar_prefetch = 0 : i64, scratch_operands = 0 : i64, tpu.core_type = #tpu.core_type<tc>} {
    %c0 = arith.constant 0 : index
    %c0_0 = arith.constant 0 : index
    %0 = vector.load %arg0[%c0, %c0_0] : memref<128x128xf32, #tpu.memory_space<vmem>>, vector<128x128xf32>
    %c0_1 = arith.constant 0 : index
    %c0_2 = arith.constant 0 : index
    %1 = vector.load %arg1[%c0_1, %c0_2] : memref<128x128xf32, #tpu.memory_space<vmem>>, vector<128x128xf32>
    %cst = arith.constant dense<0.000000e+00> : vector<128x128xf32>
    %2 = tpu.matmul %0, %1, %cst {dimension_numbers = #tpu.dot_dimension_numbers<[1], [0], [0], [1], [0, 0, 1, 1], [], []>} : vector<128x128xf32>, vector<128x128xf32>, vector<128x128xf32> -> vector<128x128xf32>
    %c0_3 = arith.constant 0 : index
    %c0_4 = arith.constant 0 : index
    %3 = vector.load %arg2[%c0_3, %c0_4] : memref<1x128xf32, #tpu.memory_space<vmem>>, vector<1x128xf32>
    %4 = vector.broadcast %3 : vector<1x128xf32> to vector<128x128xf32>
    %5 = arith.addf %2, %4 : vector<128x128xf32>
    %c0_5 = arith.constant 0 : index
    %c0_6 = arith.constant 0 : index
    %6 = vector.load %arg3[%c0_5, %c0_6] : memref<128x128xf32, #tpu.memory_space<vmem>>, vector<128x128xf32>
    tpu.vector_store %arg3[%c0_5, %c0_6], %5 {strides = array<i32>} : memref<128x128xf32, #tpu.memory_space<vmem>>, vector<128x128xf32>,
    return
  }
}

module attributes {stable_mosaic.version = 11 : i64} {
  func.func @_linear_kernel(%arg0: memref<128x128xf32, #tpu.memory_space<vmem>>, %arg1: memref<128x128xf32, #tpu.memory_space<vmem>>, %arg2: memref<1x128xf32, #tpu.memory_space<vmem>>, %arg3: memref<128x128xf32, #tpu.memory_space<vmem>>) attributes {dimension_semantics = [], scalar_prefetch = 0 : i64, scratch_operands = 0 : i64, tpu.core_type = #tpu.core_type<tc>} {
    %c0 = arith.constant 0 : index
    %c0_0 = arith.constant 0 : index
    %0 = vector.load %arg0[%c0, %c0_0] : memref<128x128xf32, #tpu.memory_space<vmem>>, vector<128x128xf32>
    %c0_1 = arith.constant 0 : index
    %c0_2 = arith.constant 0 : index
    %1 = vector.load %arg1[%c0_1, %c0_2] : memref<128x128xf32, #tpu.memory_space<vmem>>, vector<128x128xf32>
    %cst = arith.constant dense<0.000000e+00> : vector<128x128xf32>
    %2 = tpu.matmul %0, %1, %cst {dimension_numbers = #tpu.dot_dimension_numbers<[1], [0], [0], [1], [0, 0, 1, 1], [], []>} : vector<128x128xf32>, vector<128x128xf32>, vector<128x128xf32> -> vector<128x128xf32>
    %c0_3 = arith.constant 0 : index
    %c0_4 = arith.constant 0 : index
    %3 = vector.load %arg2[%c0_3, %c0_4] : memref<1x128xf32, #tpu.memory_space<vmem>>, vector<1x128xf32>
    %4 = vector.broadcast %3 : vector<1x128xf32> to vector<128x128xf32>
    %5 = arith.addf %2, %4 : vector<128x128xf32>
    %cst_5 = arith.constant 0.000000e+00 : f32
    %6 = vector.broadcast %cst_5 : f32 to vector<128x128xf32>
    %7 = arith.maximumf %5, %6 : vector<128x128xf32>
    %c0_6 = arith.constant 0 : index
    %c0_7 = arith.constant 0 : index
    %8 = vector.load %arg3[%c0_6, %c0_7] : memref<128x128xf32, #tpu.memory_space<vmem>>, vector<128x128xf32>
    tpu.vector_store %arg3[%c0_6, %c0_7], %7 {strides = array<i32>} : memref<128x128xf32, #tpu.memory_space<vmem>>, vector<128x128xf32>,
    return
  }
}

module attributes {stable_mosaic.version = 11 : i64} {
  func.func @_inner_product_kernel(%arg0: memref<128x128xf32, #tpu.memory_space<vmem>>, %arg1: memref<128x128xf32, #tpu.memory_space<vmem>>) attributes {dimension_semantics = [], scalar_prefetch = 0 : i64, scratch_operands = 0 : i64, tpu.core_type = #tpu.core_type<tc>} {
    %c0 = arith.constant 0 : index
    %c0_0 = arith.constant 0 : index
    %0 = vector.load %arg0[%c0, %c0_0] : memref<128x128xf32, #tpu.memory_space<vmem>>, vector<128x128xf32>
    %cst = arith.constant dense<0.000000e+00> : vector<128x128xf32>
    %1 = tpu.matmul %0, %0, %cst {dimension_numbers = #tpu.dot_dimension_numbers<[1], [1], [0], [0], [0, 0, 1, 0], [], []>} : vector<128x128xf32>, vector<128x128xf32>, vector<128x128xf32> -> vector<128x128xf32>
    %2 = arith.negf %1 : vector<128x128xf32>
    %3 = math.exp %2 : vector<128x128xf32>
    %cst_1 = arith.constant 1.000000e+00 : f32
    %4 = vector.broadcast %cst_1 : f32 to vector<128x128xf32>
    %5 = arith.addf %4, %3 : vector<128x128xf32>
    %6 = arith.divf %4, %5 : vector<128x128xf32>
    %c0_2 = arith.constant 0 : index
    %c0_3 = arith.constant 0 : index
    %7 = vector.load %arg1[%c0_2, %c0_3] : memref<128x128xf32, #tpu.memory_space<vmem>>, vector<128x128xf32>
    tpu.vector_store %arg1[%c0_2, %c0_3], %6 {strides = array<i32>} : memref<128x128xf32, #tpu.memory_space<vmem>>, vector<128x128xf32>,
    return
  }
}

</mosaic_0001>

<llo_original>
// kernel: mvge2_forward.8
$region0: #{mvge2_forward.8}
  #allocation0 [shape = 'u32[]', space=smem, size = 0x4, offset = 0x4, fixed_abs, tag = 'smem constant byte address 0x4 - core index']
  #allocation1 [shape = 'u32[144,128]{1,0:T(1,128)}', space=vmem, size = 0x12000, scoped, tag = 'internal scratch']
  %s0 = inlined_call_operand.vmem [shape: f32[128,128], index: 0, kind: input, shape index: {}]
  %s1 = inlined_call_operand.vmem [shape: f32[128,128], index: 1, kind: input, shape index: {}]
  %s2 = inlined_call_operand.vmem [shape: f32[1,128], index: 2, kind: input, shape index: {}]
  %s3 = inlined_call_operand.vmem [shape: f32[128,128], index: 3, kind: output, shape index: {}]
  %s4 = sld [smem:[#allocation0]]
  $region22: #{mvge2_forward.8} parent=0
    _
  %s6 = ssub.s32 1, %s4
  %s7 = scalar_select 0, %s6, %s4
  // Predicated region
  $region2: #{mvge2_forward.8} parent=0 // pred_check
    _
  $region3: #{mvge2_forward.8} parent=0 // pred_check_branch
    %9 = sbr.rel (0) target = $region5
  $region4: #{mvge2_forward.8} parent=0 // pred_region
    _
  $region5: #{mvge2_forward.8} parent=0 // pred_fallthru
    _
  // Predicated region
  $region6: #{mvge2_forward.8} parent=0 // pred_check
    _
  $region7: #{mvge2_forward.8} parent=0 // pred_check_branch
    %11 = sbr.rel (0) target = $region9
  $region8: #{mvge2_forward.8} parent=0 // pred_region
    _
  $region9: #{mvge2_forward.8} parent=0 // pred_fallthru
    _
  // Predicated region
  $region10: #{mvge2_forward.8} parent=0 // pred_check
    _
  $region11: #{mvge2_forward.8} parent=0 // pred_check_branch
    %13 = sbr.rel (0) target = $region13
  $region12: #{mvge2_forward.8} parent=0 // pred_region
    _
  $region13: #{mvge2_forward.8} parent=0 // pred_fallthru
    _
  %v14 = vld [vmem:[%s0] sm:$0xff]
  %v15 = vld [vmem:[%s0 + $0x8] sm:$0xff]
  %v16 = vld [vmem:[%s0 + $0x10] sm:$0xff]
  %v17 = vld [vmem:[%s0 + $0x18] sm:$0xff]
  %v18 = vld [vmem:[%s0 + $0x20] sm:$0xff]
  %v19 = vld [vmem:[%s0 + $0x28] sm:$0xff]
  %v20 = vld [vmem:[%s0 + $0x30] sm:$0xff]
  %v21 = vld [vmem:[%s0 + $0x38] sm:$0xff]
  %v22 = vld [vmem:[%s0 + $0x40] sm:$0xff]
  %v23 = vld [vmem:[%s0 + $0x48] sm:$0xff]
  %v24 = vld [vmem:[%s0 + $0x50] sm:$0xff]
  %v25 = vld [vmem:[%s0 + $0x58] sm:$0xff]
  %v26 = vld [vmem:[%s0 + $0x60] sm:$0xff]
  %v27 = vld [vmem:[%s0 + $0x68] sm:$0xff]
  %v28 = vld [vmem:[%s0 + $0x70] sm:$0xff]
  %v29 = vld [vmem:[%s0 + $0x78] sm:$0xff]
  %v30 = vld [vmem:[%s1] sm:$0xff]
  %v31 = vld [vmem:[%s1 + $0x8] sm:$0xff]
  %v32 = vld [vmem:[%s1 + $0x10] sm:$0xff]
  %v33 = vld [vmem:[%s1 + $0x18] sm:$0xff]
  %v34 = vld [vmem:[%s1 + $0x20] sm:$0xff]
  %v35 = vld [vmem:[%s1 + $0x28] sm:$0xff]
  %v36 = vld [vmem:[%s1 + $0x30] sm:$0xff]
  %v37 = vld [vmem:[%s1 + $0x38] sm:$0xff]
  %v38 = vld [vmem:[%s1 + $0x40] sm:$0xff]
  %v39 = vld [vmem:[%s1 + $0x48] sm:$0xff]
  %v40 = vld [vmem:[%s1 + $0x50] sm:$0xff]
  %v41 = vld [vmem:[%s1 + $0x58] sm:$0xff]
  %v42 = vld [vmem:[%s1 + $0x60] sm:$0xff]
  %v43 = vld [vmem:[%s1 + $0x68] sm:$0xff]
  %v44 = vld [vmem:[%s1 + $0x70] sm:$0xff]
  %v45 = vld [vmem:[%s1 + $0x78] sm:$0xff]
  %v46 = vld [vmem:[%s2] sm:$0x1]
  %v48 = vlaneseq
  %v49 = vshrl.u32 %v48, 7
  %v50 = vsub.s32 0, %v49
  %v51 = vrot.slane %v46, %v50
  %53 = vmatprep.subr.mxu0 0.0
  %54 = vmatpush1.msra.mxu0 %v30
  %55 = vmatprep.subr.mxu0 0.0
  %56 = vmatpush1.msra.mxu0 %v31
  %57 = vmatprep.subr.mxu0 0.0
  %58 = vmatpush1.msra.mxu0 %v32
  %59 = vmatprep.subr.mxu0 0.0
  %60 = vmatpush1.msra.mxu0 %v33
  %61 = vmatprep.subr.mxu0 0.0
  %62 = vmatpush1.msra.mxu0 %v34
  %63 = vmatprep.subr.mxu0 0.0
  %64 = vmatpush1.msra.mxu0 %v35
  %65 = vmatprep.subr.mxu0 0.0
  %66 = vmatpush1.msra.mxu0 %v36
  %67 = vmatprep.subr.mxu0 0.0
  %68 = vmatpush1.msra.mxu0 %v37
  %69 = vmatprep.subr.mxu0 0.0
  %70 = vmatpush1.msra.mxu0 %v38
  %71 = vmatprep.subr.mxu0 0.0
  %72 = vmatpush1.msra.mxu0 %v39
  %73 = vmatprep.subr.mxu0 0.0
  %74 = vmatpush1.msra.mxu0 %v40
  %75 = vmatprep.subr.mxu0 0.0
  %76 = vmatpush1.msra.mxu0 %v41
  %77 = vmatprep.subr.mxu0 0.0
  %78 = vmatpush1.msra.mxu0 %v42
  %79 = vmatprep.subr.mxu0 0.0
  %80 = vmatpush1.msra.mxu0 %v43
  %81 = vmatprep.subr.mxu0 0.0
  %82 = vmatpush1.msra.mxu0 %v44
  %83 = vmatprep.subr.mxu0 0.0
  %84 = vmatpush1.msra.mxu0 %v45
  %85 = vmatprep.subr.mxu0 0.0
  %86 = vmatpush1.msra.mxu0 0.0
  %87 = vmatprep.subr.mxu0 0.0
  %88 = vmatpush1.msra.mxu0 0.0
  %89 = vmatprep.subr.mxu0 0.0
  %90 = vmatpush1.msra.mxu0 0.0
  %91 = vmatprep.subr.mxu0 0.0
  %92 = vmatpush1.msra.mxu0 0.0
  %93 = vmatprep.subr.mxu0 0.0
  %94 = vmatpush1.msra.mxu0 0.0
  %95 = vmatprep.subr.mxu0 0.0
  %96 = vmatpush1.msra.mxu0 0.0
  %97 = vmatprep.subr.mxu0 0.0
  %98 = vmatpush1.msra.mxu0 0.0
  %99 = vmatprep.subr.mxu0 0.0
  %100 = vmatpush1.msra.mxu0 0.0
  %101 = vmatprep.subr.mxu0 0.0
  %102 = vmatpush1.msra.mxu0 0.0
  %103 = vmatprep.subr.mxu0 0.0
  %104 = vmatpush1.msra.mxu0 0.0
  %105 = vmatprep.subr.mxu0 0.0
  %106 = vmatpush1.msra.mxu0 0.0
  %107 = vmatprep.subr.mxu0 0.0
  %108 = vmatpush1.msra.mxu0 0.0
  %109 = vmatprep.subr.mxu0 0.0
  %110 = vmatpush1.msra.mxu0 0.0
  %111 = vmatprep.subr.mxu0 0.0
  %112 = vmatpush1.msra.mxu0 0.0
  %113 = vmatprep.subr.mxu0 0.0
  %114 = vmatpush1.msra.mxu0 0.0
  %115 = vmatprep.subr.mxu0 0.0
  %116 = vmatpush1.msra.mxu0 0.0
  %117 = vmatprep.mubr.f32.mxu0 0.0
  %118 = vmatmul.mubr.f32.gmra.mrb[0].mxu0 %v14
  %v119 = vpop.f32.mrb[0].mxu0
  %v120 = vadd.f32 %v51, %v119
  %v121 = vpop.f32.mrb[0].mxu0
  %122 = vmatprep.mubr.f32.mxu0 0.0
  %123 = vmatmul.mubr.f32.gmra.mrb[0].mxu0 %v15
  %v124 = vpop.f32.mrb[0].mxu0
  %v125 = vadd.f32 %v51, %v124
  %v126 = vpop.f32.mrb[0].mxu0
  %127 = vmatprep.mubr.f32.mxu0 0.0
  %128 = vmatmul.mubr.f32.gmra.mrb[0].mxu0 %v16
  %v129 = vpop.f32.mrb[0].mxu0
  %v130 = vadd.f32 %v51, %v129
  %v131 = vpop.f32.mrb[0].mxu0
  %132 = vmatprep.mubr.f32.mxu0 0.0
  %133 = vmatmul.mubr.f32.gmra.mrb[0].mxu0 %v17
  %v134 = vpop.f32.mrb[0].mxu0
  %v135 = vadd.f32 %v51, %v134
  %v136 = vpop.f32.mrb[0].mxu0
  %137 = vmatprep.mubr.f32.mxu0 0.0
  %138 = vmatmul.mubr.f32.gmra.mrb[0].mxu0 %v18
  %v139 = vpop.f32.mrb[0].mxu0
  %v140 = vadd.f32 %v51, %v139
  %v141 = vpop.f32.mrb[0].mxu0
  %142 = vmatprep.mubr.f32.mxu0 0.0
  %143 = vmatmul.mubr.f32.gmra.mrb[0].mxu0 %v19
  %v144 = vpop.f32.mrb[0].mxu0
  %v145 = vadd.f32 %v51, %v144
  %v146 = vpop.f32.mrb[0].mxu0
  %147 = vmatprep.mubr.f32.mxu0 0.0
  %148 = vmatmul.mubr.f32.gmra.mrb[0].mxu0 %v20
  %v149 = vpop.f32.mrb[0].mxu0
  %v150 = vadd.f32 %v51, %v149
  %v151 = vpop.f32.mrb[0].mxu0
  %152 = vmatprep.mubr.f32.mxu0 0.0
  %153 = vmatmul.mubr.f32.gmra.mrb[0].mxu0 %v21
  %v154 = vpop.f32.mrb[0].mxu0
  %v155 = vadd.f32 %v51, %v154
  %v156 = vpop.f32.mrb[0].mxu0
  %157 = vmatprep.mubr.f32.mxu0 0.0
  %158 = vmatmul.mubr.f32.gmra.mrb[0].mxu0 %v22
  %v159 = vpop.f32.mrb[0].mxu0
  %v160 = vadd.f32 %v51, %v159
  %v161 = vpop.f32.mrb[0].mxu0
  %162 = vmatprep.mubr.f32.mxu0 0.0
  %163 = vmatmul.mubr.f32.gmra.mrb[0].mxu0 %v23
  %v164 = vpop.f32.mrb[0].mxu0
  %v165 = vadd.f32 %v51, %v164
  %v166 = vpop.f32.mrb[0].mxu0
  %167 = vmatprep.mubr.f32.mxu0 0.0
  %168 = vmatmul.mubr.f32.gmra.mrb[0].mxu0 %v24
  %v169 = vpop.f32.mrb[0].mxu0
  %v170 = vadd.f32 %v51, %v169
  %v171 = vpop.f32.mrb[0].mxu0
  %172 = vmatprep.mubr.f32.mxu0 0.0
  %173 = vmatmul.mubr.f32.gmra.mrb[0].mxu0 %v25
  %v174 = vpop.f32.mrb[0].mxu0
  %v175 = vadd.f32 %v51, %v174
  %v176 = vpop.f32.mrb[0].mxu0
  %177 = vmatprep.mubr.f32.mxu0 0.0
  %178 = vmatmul.mubr.f32.gmra.mrb[0].mxu0 %v26
  %v179 = vpop.f32.mrb[0].mxu0
  %v180 = vadd.f32 %v51, %v179
  %v181 = vpop.f32.mrb[0].mxu0
  %182 = vmatprep.mubr.f32.mxu0 0.0
  %183 = vmatmul.mubr.f32.gmra.mrb[0].mxu0 %v27
  %v184 = vpop.f32.mrb[0].mxu0
  %v185 = vadd.f32 %v51, %v184
  %v186 = vpop.f32.mrb[0].mxu0
  %187 = vmatprep.mubr.f32.mxu0 0.0
  %188 = vmatmul.mubr.f32.gmra.mrb[0].mxu0 %v28
  %v189 = vpop.f32.mrb[0].mxu0
  %v190 = vadd.f32 %v51, %v189
  %v191 = vpop.f32.mrb[0].mxu0
  %192 = vmatprep.mubr.f32.mxu0 0.0
  %193 = vmatmul.mubr.f32.gmra.mrb[0].mxu0 %v29
  %v194 = vpop.f32.mrb[0].mxu0
  %v195 = vadd.f32 %v51, %v194
  %v196 = vpop.f32.mrb[0].mxu0
  %197 = vdwg.mxu0
  %198 = vst [vmem:[%s3] sm:$0xff] %v120
  %199 = vst [vmem:[%s3 + $0x8] sm:$0xff] %v125
  %200 = vst [vmem:[%s3 + $0x10] sm:$0xff] %v130
  %201 = vst [vmem:[%s3 + $0x18] sm:$0xff] %v135
  %202 = vst [vmem:[%s3 + $0x20] sm:$0xff] %v140
  %203 = vst [vmem:[%s3 + $0x28] sm:$0xff] %v145
  %204 = vst [vmem:[%s3 + $0x30] sm:$0xff] %v150
  %205 = vst [vmem:[%s3 + $0x38] sm:$0xff] %v155
  %206 = vst [vmem:[%s3 + $0x40] sm:$0xff] %v160
  %207 = vst [vmem:[%s3 + $0x48] sm:$0xff] %v165
  %208 = vst [vmem:[%s3 + $0x50] sm:$0xff] %v170
  %209 = vst [vmem:[%s3 + $0x58] sm:$0xff] %v175
  %210 = vst [vmem:[%s3 + $0x60] sm:$0xff] %v180
  %211 = vst [vmem:[%s3 + $0x68] sm:$0xff] %v185
  %212 = vst [vmem:[%s3 + $0x70] sm:$0xff] %v190
  %213 = vst [vmem:[%s3 + $0x78] sm:$0xff] %v195
  // Predicated region
  $region14: #{mvge2_forward.8} parent=0 // pred_check
    _
  $region15: #{mvge2_forward.8} parent=0 // pred_check_branch
    %215 = sbr.rel (0) target = $region17
  $region16: #{mvge2_forward.8} parent=0 // pred_region
    _
  $region17: #{mvge2_forward.8} parent=0 // pred_fallthru
    _
  // Predicated region
  $region18: #{mvge2_forward.8} parent=0 // pred_check
    _
  $region19: #{mvge2_forward.8} parent=0 // pred_check_branch
    %217 = sbr.rel (0) target = $region21
  $region20: #{mvge2_forward.8} parent=0 // pred_region
    _
  $region21: #{mvge2_forward.8} parent=0 // pred_fallthru
    _

// kernel: mvge2_forward.7
$region0: #{mvge2_forward.7}
  #allocation0 [shape = 'u32[]', space=smem, size = 0x4, offset = 0x4, fixed_abs, tag = 'smem constant byte address 0x4 - core index']
  #allocation1 [shape = 'u32[144,128]{1,0:T(1,128)}', space=vmem, size = 0x12000, scoped, tag = 'internal scratch']
  #allocation2 [shape = 'bf16[128,128]{1,0:T(16,128)(2,1)}', space=vmem, size = 0x8000, scoped, tag = 'scratch operand']
  %s0 = inlined_call_operand.vmem [shape: bf16[128,128], index: 0, kind: input, shape index: {}]
  %s1 = inlined_call_operand.vmem [shape: bf16[128,128], index: 1, kind: input, shape index: {}]
  %s2 = inlined_call_operand.vmem [shape: bf16[2,128,128], index: 2, kind: input, shape index: {}]
  %s3 = inlined_call_operand.vmem [shape: f32[2,1,128], index: 3, kind: input, shape index: {}]
  %s4 = inlined_call_operand.vmem [shape: f32[2,128,128], index: 4, kind: output, shape index: {}]
  %s5 = sld [smem:[#allocation0]]
  $region53: #{mvge2_forward.7} parent=0
    _
  %s7 = ssub.s32 1, %s5
  %s8 = scalar_select 0, %s7, %s5
  loop: start=0, step=1, limit=4
  $region2: #{mvge2_forward.7} parent=0 // loop_pre_header
    _
  $region3: #{mvge2_forward.7} parent=0 // loop_header
    %s10 = sphi 0, %s14
    %p11 = scmp.ge.s32.totalorder %s10, 4
    %s18 = sphi 0, %s18
    %s20 = sphi 0, %s18
    %s21 = sphi 0, %s20
    %s35 = sphi 0, %s21
    %s39 = sphi 0, %s39
    %s41 = sphi 0, %s39
    %s42 = sphi 0, %s41
    %s56 = sphi 0, %s42
    %s62 = sphi 0, %s64
    %s65 = sphi 0, %s62
    %s66 = sphi 0, %s65
    %s82 = sphi 0, %s66
    %s88 = sphi 0, %s90
    %s91 = sphi 0, %s88
    %s92 = sphi 0, %s91
    %s108 = sphi 0, %s92
    %s114 = sphi 0, %s116
    %s117 = sphi 0, %s114
    %s118 = sphi 0, %s117
    %s134 = sphi 0, %s118
  $region4: #{mvge2_forward.7} parent=0 // loop_header_branch
    %13 = sbr.rel (%p11) target = $region8
  $region5: #{mvge2_forward.7} parent=0 // loop_body
    %s15 = ssub.s32 %s10, 1
    %s16 = ssub.s32 %s10, 2
    %s17 = sadd.s32 %s10, 1
    %s19 = sadd.s32 %s18, 1
    %p22 = scmp.eq.s32.totalorder %s10, 1
    %p23 = scmp.ne.s32.totalorder %s18, %s20
    %p24 = scmp.eq.s32.totalorder %s10, 0
    %p25 = por %p23, %p24
    %p26 = scmp.ne.s32.totalorder %s18, %s20
    %p27 = scmp.eq.s32.totalorder %s15, 1
    %p28 = por %p26, %p27
    %p29 = scmp.ne.s32.totalorder %s20, %s21
    %p30 = scmp.eq.s32.totalorder %s15, 0
    %p31 = por %p29, %p30
    %p32 = scmp.ne.s32.totalorder %s20, %s21
    %p33 = scmp.eq.s32.totalorder %s16, 1
    %p34 = por %p32, %p33
    %p36 = scmp.ne.s32.totalorder %s21, %s35
    %p37 = scmp.eq.s32.totalorder %s16, 0
    %p38 = por %p36, %p37
    %s40 = sadd.s32 %s39, 1
    %p43 = scmp.eq.s32.totalorder %s10, 1
    %p44 = scmp.ne.s32.totalorder %s39, %s41
    %p45 = scmp.eq.s32.totalorder %s10, 0
    %p46 = por %p44, %p45
    %p47 = scmp.ne.s32.totalorder %s39, %s41
    %p48 = scmp.eq.s32.totalorder %s15, 1
    %p49 = por %p47, %p48
    %p50 = scmp.ne.s32.totalorder %s41, %s42
    %p51 = scmp.eq.s32.totalorder %s15, 0
    %p52 = por %p50, %p51
    %p53 = scmp.ne.s32.totalorder %s41, %s42
    %p54 = scmp.eq.s32.totalorder %s16, 1
    %p55 = por %p53, %p54
    %p57 = scmp.ne.s32.totalorder %s42, %s56
    %p58 = scmp.eq.s32.totalorder %s16, 0
    %p59 = por %p57, %p58
    %s60 = ssub.s32 %s10, %s17
    %p61 = scmp.eq.s32.totalorder %s60, 0
    %s63 = sadd.s32 %s62, 1
    %s64 = scalar_select %p61, %s62, %s63
    %p67 = pneg %p61
    %p68 = scmp.eq.s32.totalorder %s10, 1
    %p69 = por %p67, %p68
    %p70 = scmp.ne.s32.totalorder %s62, %s65
    %p71 = scmp.eq.s32.totalorder %s10, 0
    %p72 = por %p70, %p71
    %p73 = scmp.ne.s32.totalorder %s62, %s65
    %p74 = scmp.eq.s32.totalorder %s15, 1
    %p75 = por %p73, %p74
    %p76 = scmp.ne.s32.totalorder %s65, %s66
    %p77 = scmp.eq.s32.totalorder %s15, 0
    %p78 = por %p76, %p77
    %p79 = scmp.ne.s32.totalorder %s65, %s66
    %p80 = scmp.eq.s32.totalorder %s16, 1
    %p81 = por %p79, %p80
    %p83 = scmp.ne.s32.totalorder %s66, %s82
    %p84 = scmp.eq.s32.totalorder %s16, 0
    %p85 = por %p83, %p84
    %s86 = ssub.s32 %s10, %s17
    %p87 = scmp.eq.s32.totalorder %s86, 0
    %s89 = sadd.s32 %s88, 1
    %s90 = scalar_select %p87, %s88, %s89
    %p93 = pneg %p87
    %p94 = scmp.eq.s32.totalorder %s10, 1
    %p95 = por %p93, %p94
    %p96 = scmp.ne.s32.totalorder %s88, %s91
    %p97 = scmp.eq.s32.totalorder %s10, 0
    %p98 = por %p96, %p97
    %p99 = scmp.ne.s32.totalorder %s88, %s91
    %p100 = scmp.eq.s32.totalorder %s15, 1
    %p101 = por %p99, %p100
    %p102 = scmp.ne.s32.totalorder %s91, %s92
    %p103 = scmp.eq.s32.totalorder %s15, 0
    %p104 = por %p102, %p103
    %p105 = scmp.ne.s32.totalorder %s91, %s92
    %p106 = scmp.eq.s32.totalorder %s16, 1
    %p107 = por %p105, %p106
    %p109 = scmp.ne.s32.totalorder %s92, %s108
    %p110 = scmp.eq.s32.totalorder %s16, 0
    %p111 = por %p109, %p110
    %s112 = ssub.s32 %s10, %s17
    %p113 = scmp.eq.s32.totalorder %s112, 0
    %s115 = sadd.s32 %s114, 1
    %s116 = scalar_select %p113, %s114, %s115
    %p119 = pneg %p113
    %p120 = scmp.eq.s32.totalorder %s10, 1
    %p121 = por %p119, %p120
    %p122 = scmp.ne.s32.totalorder %s114, %s117
    %p123 = scmp.eq.s32.totalorder %s10, 0
    %p124 = por %p122, %p123
    %p125 = scmp.ne.s32.totalorder %s114, %s117
    %p126 = scmp.eq.s32.totalorder %s15, 1
    %p127 = por %p125, %p126
    %p128 = scmp.ne.s32.totalorder %s117, %s118
    %p129 = scmp.eq.s32.totalorder %s15, 0
    %p130 = por %p128, %p129
    %p131 = scmp.ne.s32.totalorder %s117, %s118
    %p132 = scmp.eq.s32.totalorder %s16, 1
    %p133 = por %p131, %p132
    %p135 = scmp.ne.s32.totalorder %s118, %s134
    %p136 = scmp.eq.s32.totalorder %s16, 0
    %p137 = por %p135, %p136
    %p138 = scmp.le.s32.totalorder 1, %s10
    %p139 = scmp.lt.s32.totalorder %s10, 3
    %p140 = pnand %p138, %p139
    %p141 = pneg %p140
    // Predicated region
    $region9: #{mvge2_forward.7} parent=5 // pred_check
      _
    $region10: #{mvge2_forward.7} parent=5 // pred_check_branch
      %143 = sbr.rel (%p140) target = $region12
    $region11: #{mvge2_forward.7} parent=5 // pred_region
      %s144 = ssub.s32 %s10, 1
      // Predicated region
      $region13: #{mvge2_forward.7} parent=11 // pred_check
        %p145 = pneg %p31
      $region14: #{mvge2_forward.7} parent=11 // pred_check_branch
        %147 = sbr.rel (%p145) target = $region16
      $region15: #{mvge2_forward.7} parent=11 // pred_region
        _
      $region16: #{mvge2_forward.7} parent=11 // pred_fallthru
        _
      // Predicated region
      $region17: #{mvge2_forward.7} parent=11 // pred_check
        %p148 = pneg %p52
      $region18: #{mvge2_forward.7} parent=11 // pred_check_branch
        %150 = sbr.rel (%p148) target = $region20
      $region19: #{mvge2_forward.7} parent=11 // pred_region
        _
      $region20: #{mvge2_forward.7} parent=11 // pred_fallthru
        _
    $region12: #{mvge2_forward.7} parent=5 // pred_fallthru
      _
    %p151 = scmp.lt.s32.totalorder %s10, 2
    // Predicated region
    $region21: #{mvge2_forward.7} parent=5 // pred_check
      %p152 = pneg %p151
    $region22: #{mvge2_forward.7} parent=5 // pred_check_branch
      %154 = sbr.rel (%p152) target = $region24
    $region23: #{mvge2_forward.7} parent=5 // pred_region
      // Predicated region
      $region25: #{mvge2_forward.7} parent=23 // pred_check
        %p155 = pneg %p72
      $region26: #{mvge2_forward.7} parent=23 // pred_check_branch
        %157 = sbr.rel (%p155) target = $region28
      $region27: #{mvge2_forward.7} parent=23 // pred_region
        %p158 = scmp.lt.s32.totalorder %s10, 1
        %s159 = scalar_select %p158, %s10, 1
        %s160 = smul.addr %s159, 16
        %s161 = smul.addr %s160, 4
        %s162 = scalar_lea.vmem %s2, %s161
      $region28: #{mvge2_forward.7} parent=23 // pred_fallthru
        _
      // Predicated region
      $region29: #{mvge2_forward.7} parent=23 // pred_check
        %p163 = pneg %p98
      $region30: #{mvge2_forward.7} parent=23 // pred_check_branch
        %165 = sbr.rel (%p163) target = $region32
      $region31: #{mvge2_forward.7} parent=23 // pred_region
        %p166 = scmp.lt.s32.totalorder %s10, 1
        %s167 = scalar_select %p166, %s10, 1
        %s168 = scalar_lea.vmem %s3, %s167
      $region32: #{mvge2_forward.7} parent=23 // pred_fallthru
        _
    $region24: #{mvge2_forward.7} parent=5 // pred_fallthru
      _
    %p169 = scmp.le.s32.totalorder 1, %s10
    %p170 = scmp.lt.s32.totalorder %s10, 3
    %p171 = pnand %p169, %p170
    %p172 = pneg %p171
    // Predicated region
    $region33: #{mvge2_forward.7} parent=5 // pred_check
      _
    $region34: #{mvge2_forward.7} parent=5 // pred_check_branch
      %174 = sbr.rel (%p171) target = $region36
    $region35: #{mvge2_forward.7} parent=5 // pred_region
      %s175 = ssub.s32 %s10, 1
      %p176 = pneg %p31
      %p177 = pneg %p28
      %p178 = pneg %p52
      %p179 = pneg %p49
      %p180 = scmp.lt.s32.totalorder %s15, 1
      %s181 = scalar_select %p180, %s15, 1
      %s182 = smul.addr %s181, 16
      %s183 = smul.addr %s182, 4
      %s184 = scalar_lea.vmem %s2, %s183
      %p185 = pneg %p78
      %p186 = pneg %p75
      %p187 = scmp.lt.s32.totalorder %s15, 1
      %s188 = scalar_select %p187, %s15, 1
      %s189 = scalar_lea.vmem %s3, %s188
      %p190 = pneg %p104
      %p191 = pneg %p101
      %p192 = pneg %p130
      %p193 = pneg %p127
      %p194 = scmp.lt.s32.totalorder %s15, 1
      %s195 = scalar_select %p194, %s15, 1
      %s196 = smul.addr %s195, 16
      %s197 = smul.addr %s196, 8
      %s198 = scalar_lea.vmem %s4, %s197
      %p199 = scmp.lt.s32.totalorder %s15, 1
      %s200 = scalar_select %p199, %s15, 1
      %s201 = smul.addr %s200, 16
      %s202 = smul.addr %s201, 4
      %s203 = scalar_lea.vmem %s2, %s202
      %p204 = scmp.lt.s32.totalorder %s15, 1
      %s205 = scalar_select %p204, %s15, 1
      %s206 = scalar_lea.vmem %s3, %s205
      %p207 = scmp.lt.s32.totalorder %s15, 1
      %s208 = scalar_select %p207, %s15, 1
      %s209 = smul.addr %s208, 16
      %s210 = smul.addr %s209, 8
      %s211 = scalar_lea.vmem %s4, %s210
      %p213 = scmp.eq.s32.totalorder %s15, 0
      // Predicated region
      $region37: #{mvge2_forward.7} parent=35 // pred_check
        %p214 = pneg %p213
      $region38: #{mvge2_forward.7} parent=35 // pred_check_branch
        %216 = sbr.rel (%p214) target = $region40
      $region39: #{mvge2_forward.7} parent=35 // pred_region
        %v217 = vld [vmem:[%s1] sm:$0xf]
        %v218 = vld [vmem:[%s1 + $0x4] sm:$0xf]
        %v219 = vld [vmem:[%s1 + $0x8] sm:$0xf]
        %v220 = vld [vmem:[%s1 + $0xc] sm:$0xf]
        %v221 = vld [vmem:[%s1 + $0x10] sm:$0xf]
        %v222 = vld [vmem:[%s1 + $0x14] sm:$0xf]
        %v223 = vld [vmem:[%s1 + $0x18] sm:$0xf]
        %v224 = vld [vmem:[%s1 + $0x1c] sm:$0xf]
        %v225 = vld [vmem:[%s1 + $0x20] sm:$0xf]
        %v226 = vld [vmem:[%s1 + $0x24] sm:$0xf]
        %v227 = vld [vmem:[%s1 + $0x28] sm:$0xf]
        %v228 = vld [vmem:[%s1 + $0x2c] sm:$0xf]
        %v229 = vld [vmem:[%s1 + $0x30] sm:$0xf]
        %v230 = vld [vmem:[%s1 + $0x34] sm:$0xf]
        %v231 = vld [vmem:[%s1 + $0x38] sm:$0xf]
        %v232 = vld [vmem:[%s1 + $0x3c] sm:$0xf]
        %v249 = vunpack.c.l.b16 %v217
        %v250 = vunpack.c.l.b16 %v218
        %v251 = vunpack.c.l.b16 %v219
        %v252 = vunpack.c.l.b16 %v220
        %v253 = vunpack.c.l.b16 %v221
        %v254 = vunpack.c.l.b16 %v222
        %v255 = vunpack.c.l.b16 %v223
        %v256 = vunpack.c.l.b16 %v224
        %v257 = vunpack.c.l.b16 %v225
        %v258 = vunpack.c.l.b16 %v226
        %v259 = vunpack.c.l.b16 %v227
        %v260 = vunpack.c.l.b16 %v228
        %v261 = vunpack.c.l.b16 %v229
        %v262 = vunpack.c.l.b16 %v230
        %v263 = vunpack.c.l.b16 %v231
        %v264 = vunpack.c.l.b16 %v232
        %v265 = vpack.c.b16 %v250, %v249
        %v266 = vpack.c.b16 %v252, %v251
        %v267 = vpack.c.b16 %v254, %v253
        %v268 = vpack.c.b16 %v256, %v255
        %v269 = vpack.c.b16 %v258, %v257
        %v270 = vpack.c.b16 %v260, %v259
        %v271 = vpack.c.b16 %v262, %v261
        %v272 = vpack.c.b16 %v264, %v263
        %281 = vst [vmem:[#allocation2] sm:$0xff] %v265
        %282 = vst [vmem:[#allocation2 + $0x8] sm:$0xff] %v266
        %283 = vst [vmem:[#allocation2 + $0x10] sm:$0xff] %v267
        %284 = vst [vmem:[#allocation2 + $0x18] sm:$0xff] %v268
        %285 = vst [vmem:[#allocation2 + $0x20] sm:$0xff] %v269
        %286 = vst [vmem:[#allocation2 + $0x28] sm:$0xff] %v270
        %287 = vst [vmem:[#allocation2 + $0x30] sm:$0xff] %v271
        %288 = vst [vmem:[#allocation2 + $0x38] sm:$0xff] %v272
      $region40: #{mvge2_forward.7} parent=35 // pred_fallthru
        _
      %v289 = vld [vmem:[#allocation2] sm:$0xff]
      %v290 = vld [vmem:[#allocation2 + $0x8] sm:$0xff]
      %v291 = vld [vmem:[#allocation2 + $0x10] sm:$0xff]
      %v292 = vld [vmem:[#allocation2 + $0x18] sm:$0xff]
      %v293 = vld [vmem:[#allocation2 + $0x20] sm:$0xff]
      %v294 = vld [vmem:[#allocation2 + $0x28] sm:$0xff]
      %v295 = vld [vmem:[#allocation2 + $0x30] sm:$0xff]
      %v296 = vld [vmem:[#allocation2 + $0x38] sm:$0xff]
      %v297 = vld [vmem:[%s203] sm:$0xf]
      %v298 = vld [vmem:[%s203 + $0x4] sm:$0xf]
      %v299 = vld [vmem:[%s203 + $0x8] sm:$0xf]
      %v300 = vld [vmem:[%s203 + $0xc] sm:$0xf]
      %v301 = vld [vmem:[%s203 + $0x10] sm:$0xf]
      %v302 = vld [vmem:[%s203 + $0x14] sm:$0xf]
      %v303 = vld [vmem:[%s203 + $0x18] sm:$0xf]
      %v304 = vld [vmem:[%s203 + $0x1c] sm:$0xf]
      %v305 = vld [vmem:[%s203 + $0x20] sm:$0xf]
      %v306 = vld [vmem:[%s203 + $0x24] sm:$0xf]
      %v307 = vld [vmem:[%s203 + $0x28] sm:$0xf]
      %v308 = vld [vmem:[%s203 + $0x2c] sm:$0xf]
      %v309 = vld [vmem:[%s203 + $0x30] sm:$0xf]
      %v310 = vld [vmem:[%s203 + $0x34] sm:$0xf]
      %v311 = vld [vmem:[%s203 + $0x38] sm:$0xf]
      %v312 = vld [vmem:[%s203 + $0x3c] sm:$0xf]
      %v329 = vunpack.c.l.b16 %v297
      %v330 = vunpack.c.l.b16 %v298
      %v331 = vunpack.c.l.b16 %v299
      %v332 = vunpack.c.l.b16 %v300
      %v333 = vunpack.c.l.b16 %v301
      %v334 = vunpack.c.l.b16 %v302
      %v335 = vunpack.c.l.b16 %v303
      %v336 = vunpack.c.l.b16 %v304
      %v337 = vunpack.c.l.b16 %v305
      %v338 = vunpack.c.l.b16 %v306
      %v339 = vunpack.c.l.b16 %v307
      %v340 = vunpack.c.l.b16 %v308
      %v341 = vunpack.c.l.b16 %v309
      %v342 = vunpack.c.l.b16 %v310
      %v343 = vunpack.c.l.b16 %v311
      %v344 = vunpack.c.l.b16 %v312
      %v345 = vpack.c.b16 %v330, %v329
      %v346 = vpack.c.b16 %v332, %v331
      %v347 = vpack.c.b16 %v334, %v333
      %v348 = vpack.c.b16 %v336, %v335
      %v349 = vpack.c.b16 %v338, %v337
      %v350 = vpack.c.b16 %v340, %v339
      %v351 = vpack.c.b16 %v342, %v341
      %v352 = vpack.c.b16 %v344, %v343
      %361 = vmatprep.subr.bf16.mxu0 0
      %362 = vmatpush1.bf16.msra.mxu0 %v345
      %363 = vmatprep.subr.bf16.mxu0 0
      %364 = vmatpush1.bf16.msra.mxu0 %v346
      %365 = vmatprep.subr.bf16.mxu0 0
      %366 = vmatpush1.bf16.msra.mxu0 %v347
      %367 = vmatprep.subr.bf16.mxu0 0
      %368 = vmatpush1.bf16.msra.mxu0 %v348
      %369 = vmatprep.subr.bf16.mxu0 0
      %370 = vmatpush1.bf16.msra.mxu0 %v349
      %371 = vmatprep.subr.bf16.mxu0 0
      %372 = vmatpush1.bf16.msra.mxu0 %v350
      %373 = vmatprep.subr.bf16.mxu0 0
      %374 = vmatpush1.bf16.msra.mxu0 %v351
      %375 = vmatprep.subr.bf16.mxu0 0
      %376 = vmatpush1.bf16.msra.mxu0 %v352
      %377 = vmatprep.subr.bf16.mxu0 0
      %378 = vmatpush1.bf16.msra.mxu0 0
      %379 = vmatprep.subr.bf16.mxu0 0
      %380 = vmatpush1.bf16.msra.mxu0 0
      %381 = vmatprep.subr.bf16.mxu0 0
      %382 = vmatpush1.bf16.msra.mxu0 0
      %383 = vmatprep.subr.bf16.mxu0 0
      %384 = vmatpush1.bf16.msra.mxu0 0
      %385 = vmatprep.subr.bf16.mxu0 0
      %386 = vmatpush1.bf16.msra.mxu0 0
      %387 = vmatprep.subr.bf16.mxu0 0
      %388 = vmatpush1.bf16.msra.mxu0 0
      %389 = vmatprep.subr.bf16.mxu0 0
      %390 = vmatpush1.bf16.msra.mxu0 0
      %391 = vmatprep.subr.bf16.mxu0 0
      %392 = vmatpush1.bf16.msra.mxu0 0
      %393 = vmatprep.mubr.bf16.mxu0 0
      %394 = vmatmul.mubr.bf16.gmra.mrb[0].mxu0 %v289
      %v395 = vpop.f32.mrb[0].mxu0
      %v396 = vadd.f32 0.0, %v395
      %v397 = vpop.f32.mrb[0].mxu0
      %v398 = vpop.f32.mrb[0].mxu0
      %v399 = vadd.f32 0.0, %v398
      %v400 = vpop.f32.mrb[0].mxu0
      %401 = vmatprep.mubr.bf16.mxu0 0
      %402 = vmatmul.mubr.bf16.gmra.mrb[0].mxu0 %v290
      %v403 = vpop.f32.mrb[0].mxu0
      %v404 = vadd.f32 0.0, %v403
      %v405 = vpop.f32.mrb[0].mxu0
      %v406 = vpop.f32.mrb[0].mxu0
      %v407 = vadd.f32 0.0, %v406
      %v408 = vpop.f32.mrb[0].mxu0
      %409 = vmatprep.mubr.bf16.mxu0 0
      %410 = vmatmul.mubr.bf16.gmra.mrb[0].mxu0 %v291
      %v411 = vpop.f32.mrb[0].mxu0
      %v412 = vadd.f32 0.0, %v411
      %v413 = vpop.f32.mrb[0].mxu0
      %v414 = vpop.f32.mrb[0].mxu0
      %v415 = vadd.f32 0.0, %v414
      %v416 = vpop.f32.mrb[0].mxu0
      %417 = vmatprep.mubr.bf16.mxu0 0
      %418 = vmatmul.mubr.bf16.gmra.mrb[0].mxu0 %v292
      %v419 = vpop.f32.mrb[0].mxu0
      %v420 = vadd.f32 0.0, %v419
      %v421 = vpop.f32.mrb[0].mxu0
      %v422 = vpop.f32.mrb[0].mxu0
      %v423 = vadd.f32 0.0, %v422
      %v424 = vpop.f32.mrb[0].mxu0
      %425 = vmatprep.mubr.bf16.mxu0 0
      %426 = vmatmul.mubr.bf16.gmra.mrb[0].mxu0 %v293
      %v427 = vpop.f32.mrb[0].mxu0
      %v428 = vadd.f32 0.0, %v427
      %v429 = vpop.f32.mrb[0].mxu0
      %v430 = vpop.f32.mrb[0].mxu0
      %v431 = vadd.f32 0.0, %v430
      %v432 = vpop.f32.mrb[0].mxu0
      %433 = vmatprep.mubr.bf16.mxu0 0
      %434 = vmatmul.mubr.bf16.gmra.mrb[0].mxu0 %v294
      %v435 = vpop.f32.mrb[0].mxu0
      %v436 = vadd.f32 0.0, %v435
      %v437 = vpop.f32.mrb[0].mxu0
      %v438 = vpop.f32.mrb[0].mxu0
      %v439 = vadd.f32 0.0, %v438
      %v440 = vpop.f32.mrb[0].mxu0
      %441 = vmatprep.mubr.bf16.mxu0 0
      %442 = vmatmul.mubr.bf16.gmra.mrb[0].mxu0 %v295
      %v443 = vpop.f32.mrb[0].mxu0
      %v444 = vadd.f32 0.0, %v443
      %v445 = vpop.f32.mrb[0].mxu0
      %v446 = vpop.f32.mrb[0].mxu0
      %v447 = vadd.f32 0.0, %v446
      %v448 = vpop.f32.mrb[0].mxu0
      %449 = vmatprep.mubr.bf16.mxu0 0
      %450 = vmatmul.mubr.bf16.gmra.mrb[0].mxu0 %v296
      %v451 = vpop.f32.mrb[0].mxu0
      %v452 = vadd.f32 0.0, %v451
      %v453 = vpop.f32.mrb[0].mxu0
      %v454 = vpop.f32.mrb[0].mxu0
      %v455 = vadd.f32 0.0, %v454
      %v456 = vpop.f32.mrb[0].mxu0
      %457 = vdwg.mxu0
      %v458 = vld [vmem:[%s0] sm:$0xf]
      %v459 = vld [vmem:[%s0 + $0x4] sm:$0xf]
      %v460 = vld [vmem:[%s0 + $0x8] sm:$0xf]
      %v461 = vld [vmem:[%s0 + $0xc] sm:$0xf]
      %v462 = vld [vmem:[%s0 + $0x10] sm:$0xf]
      %v463 = vld [vmem:[%s0 + $0x14] sm:$0xf]
      %v464 = vld [vmem:[%s0 + $0x18] sm:$0xf]
      %v465 = vld [vmem:[%s0 + $0x1c] sm:$0xf]
      %v466 = vld [vmem:[%s0 + $0x20] sm:$0xf]
      %v467 = vld [vmem:[%s0 + $0x24] sm:$0xf]
      %v468 = vld [vmem:[%s0 + $0x28] sm:$0xf]
      %v469 = vld [vmem:[%s0 + $0x2c] sm:$0xf]
      %v470 = vld [vmem:[%s0 + $0x30] sm:$0xf]
      %v471 = vld [vmem:[%s0 + $0x34] sm:$0xf]
      %v472 = vld [vmem:[%s0 + $0x38] sm:$0xf]
      %v473 = vld [vmem:[%s0 + $0x3c] sm:$0xf]
      %v474 = vpack.c.bf16 %v399, %v396
      %v475 = vpack.c.bf16 %v407, %v404
      %v476 = vpack.c.bf16 %v415, %v412
      %v477 = vpack.c.bf16 %v423, %v420
      %v478 = vpack.c.bf16 %v431, %v428
      %v479 = vpack.c.bf16 %v439, %v436
      %v480 = vpack.c.bf16 %v447, %v444
      %v481 = vpack.c.bf16 %v455, %v452
      %v482 = vld [vmem:[%s206] sm:$0x1]
      %v484 = vlaneseq
      %v485 = vshrl.u32 %v484, 7
      %v486 = vsub.s32 0, %v485
      %v487 = vrot.slane %v482, %v486
      %v505 = vunpack.c.l.b16 %v458
      %v506 = vunpack.c.l.b16 %v459
      %v507 = vunpack.c.l.b16 %v460
      %v508 = vunpack.c.l.b16 %v461
      %v509 = vunpack.c.l.b16 %v462
      %v510 = vunpack.c.l.b16 %v463
      %v511 = vunpack.c.l.b16 %v464
      %v512 = vunpack.c.l.b16 %v465
      %v513 = vunpack.c.l.b16 %v466
      %v514 = vunpack.c.l.b16 %v467
      %v515 = vunpack.c.l.b16 %v468
      %v516 = vunpack.c.l.b16 %v469
      %v517 = vunpack.c.l.b16 %v470
      %v518 = vunpack.c.l.b16 %v471
      %v519 = vunpack.c.l.b16 %v472
      %v520 = vunpack.c.l.b16 %v473
      %v521 = vpack.c.b16 %v506, %v505
      %v522 = vpack.c.b16 %v508, %v507
      %v523 = vpack.c.b16 %v510, %v509
      %v524 = vpack.c.b16 %v512, %v511
      %v525 = vpack.c.b16 %v514, %v513
      %v526 = vpack.c.b16 %v516, %v515
      %v527 = vpack.c.b16 %v518, %v517
      %v528 = vpack.c.b16 %v520, %v519
      %537 = vmatprep.subr.bf16.mxu0 0
      %538 = vmatpush1.bf16.msra.mxu0 %v474
      %539 = vmatprep.subr.bf16.mxu0 0
      %540 = vmatpush1.bf16.msra.mxu0 %v475
      %541 = vmatprep.subr.bf16.mxu0 0
      %542 = vmatpush1.bf16.msra.mxu0 %v476
      %543 = vmatprep.subr.bf16.mxu0 0
      %544 = vmatpush1.bf16.msra.mxu0 %v477
      %545 = vmatprep.subr.bf16.mxu0 0
      %546 = vmatpush1.bf16.msra.mxu0 %v478
      %547 = vmatprep.subr.bf16.mxu0 0
      %548 = vmatpush1.bf16.msra.mxu0 %v479
      %549 = vmatprep.subr.bf16.mxu0 0
      %550 = vmatpush1.bf16.msra.mxu0 %v480
      %551 = vmatprep.subr.bf16.mxu0 0
      %552 = vmatpush1.bf16.msra.mxu0 %v481
      %553 = vmatprep.subr.bf16.mxu0 0
      %554 = vmatpush1.bf16.msra.mxu0 0
      %555 = vmatprep.subr.bf16.mxu0 0
      %556 = vmatpush1.bf16.msra.mxu0 0
      %557 = vmatprep.subr.bf16.mxu0 0
      %558 = vmatpush1.bf16.msra.mxu0 0
      %559 = vmatprep.subr.bf16.mxu0 0
      %560 = vmatpush1.bf16.msra.mxu0 0
      %561 = vmatprep.subr.bf16.mxu0 0
      %562 = vmatpush1.bf16.msra.mxu0 0
      %563 = vmatprep.subr.bf16.mxu0 0
      %564 = vmatpush1.bf16.msra.mxu0 0
      %565 = vmatprep.subr.bf16.mxu0 0
      %566 = vmatpush1.bf16.msra.mxu0 0
      %567 = vmatprep.subr.bf16.mxu0 0
      %568 = vmatpush1.bf16.msra.mxu0 0
      %569 = vmatprep.mubr.bf16.mxu0 0
      %570 = vmatmul.mubr.bf16.gmra.mrb[0].mxu0 %v521
      %v571 = vpop.f32.mrb[0].mxu0
      %v572 = vadd.f32 %v487, %v571
      %v573 = vpop.f32.mrb[0].mxu0
      %v574 = vpop.f32.mrb[0].mxu0
      %v575 = vadd.f32 %v487, %v574
      %v576 = vpop.f32.mrb[0].mxu0
      %577 = vmatprep.mubr.bf16.mxu0 0
      %578 = vmatmul.mubr.bf16.gmra.mrb[0].mxu0 %v522
      %v579 = vpop.f32.mrb[0].mxu0
      %v580 = vadd.f32 %v487, %v579
      %v581 = vpop.f32.mrb[0].mxu0
      %v582 = vpop.f32.mrb[0].mxu0
      %v583 = vadd.f32 %v487, %v582
      %v584 = vpop.f32.mrb[0].mxu0
      %585 = vmatprep.mubr.bf16.mxu0 0
      %586 = vmatmul.mubr.bf16.gmra.mrb[0].mxu0 %v523
      %v587 = vpop.f32.mrb[0].mxu0
      %v588 = vadd.f32 %v487, %v587
      %v589 = vpop.f32.mrb[0].mxu0
      %v590 = vpop.f32.mrb[0].mxu0
      %v591 = vadd.f32 %v487, %v590
      %v592 = vpop.f32.mrb[0].mxu0
      %593 = vmatprep.mubr.bf16.mxu0 0
      %594 = vmatmul.mubr.bf16.gmra.mrb[0].mxu0 %v524
      %v595 = vpop.f32.mrb[0].mxu0
      %v596 = vadd.f32 %v487, %v595
      %v597 = vpop.f32.mrb[0].mxu0
      %v598 = vpop.f32.mrb[0].mxu0
      %v599 = vadd.f32 %v487, %v598
      %v600 = vpop.f32.mrb[0].mxu0
      %601 = vmatprep.mubr.bf16.mxu0 0
      %602 = vmatmul.mubr.bf16.gmra.mrb[0].mxu0 %v525
      %v603 = vpop.f32.mrb[0].mxu0
      %v604 = vadd.f32 %v487, %v603
      %v605 = vpop.f32.mrb[0].mxu0
      %v606 = vpop.f32.mrb[0].mxu0
      %v607 = vadd.f32 %v487, %v606
      %v608 = vpop.f32.mrb[0].mxu0
      %609 = vmatprep.mubr.bf16.mxu0 0
      %610 = vmatmul.mubr.bf16.gmra.mrb[0].mxu0 %v526
      %v611 = vpop.f32.mrb[0].mxu0
      %v612 = vadd.f32 %v487, %v611
      %v613 = vpop.f32.mrb[0].mxu0
      %v614 = vpop.f32.mrb[0].mxu0
      %v615 = vadd.f32 %v487, %v614
      %v616 = vpop.f32.mrb[0].mxu0
      %617 = vmatprep.mubr.bf16.mxu0 0
      %618 = vmatmul.mubr.bf16.gmra.mrb[0].mxu0 %v527
      %v619 = vpop.f32.mrb[0].mxu0
      %v620 = vadd.f32 %v487, %v619
      %v621 = vpop.f32.mrb[0].mxu0
      %v622 = vpop.f32.mrb[0].mxu0
      %v623 = vadd.f32 %v487, %v622
      %v624 = vpop.f32.mrb[0].mxu0
      %625 = vmatprep.mubr.bf16.mxu0 0
      %626 = vmatmul.mubr.bf16.gmra.mrb[0].mxu0 %v528
      %v627 = vpop.f32.mrb[0].mxu0
      %v628 = vadd.f32 %v487, %v627
      %v629 = vpop.f32.mrb[0].mxu0
      %v630 = vpop.f32.mrb[0].mxu0
      %v631 = vadd.f32 %v487, %v630
      %v632 = vpop.f32.mrb[0].mxu0
      %633 = vdwg.mxu0
      %v634 = vpack.c.bf16 %v575, %v572
      %v635 = vpack.c.bf16 %v583, %v580
      %v636 = vpack.c.bf16 %v591, %v588
      %v637 = vpack.c.bf16 %v599, %v596
      %v638 = vpack.c.bf16 %v607, %v604
      %v639 = vpack.c.bf16 %v615, %v612
      %v640 = vpack.c.bf16 %v623, %v620
      %v641 = vpack.c.bf16 %v631, %v628
      %642 = vst [vmem:[#allocation2] sm:$0xff] %v634
      %643 = vst [vmem:[#allocation2 + $0x8] sm:$0xff] %v635
      %644 = vst [vmem:[#allocation2 + $0x10] sm:$0xff] %v636
      %645 = vst [vmem:[#allocation2 + $0x18] sm:$0xff] %v637
      %646 = vst [vmem:[#allocation2 + $0x20] sm:$0xff] %v638
      %647 = vst [vmem:[#allocation2 + $0x28] sm:$0xff] %v639
      %648 = vst [vmem:[#allocation2 + $0x30] sm:$0xff] %v640
      %649 = vst [vmem:[#allocation2 + $0x38] sm:$0xff] %v641
      %650 = vst [vmem:[%s211] sm:$0xff] %v572
      %651 = vst [vmem:[%s211 + $0x8] sm:$0xff] %v575
      %652 = vst [vmem:[%s211 + $0x10] sm:$0xff] %v580
      %653 = vst [vmem:[%s211 + $0x18] sm:$0xff] %v583
      %654 = vst [vmem:[%s211 + $0x20] sm:$0xff] %v588
      %655 = vst [vmem:[%s211 + $0x28] sm:$0xff] %v591
      %656 = vst [vmem:[%s211 + $0x30] sm:$0xff] %v596
      %657 = vst [vmem:[%s211 + $0x38] sm:$0xff] %v599
      %658 = vst [vmem:[%s211 + $0x40] sm:$0xff] %v604
      %659 = vst [vmem:[%s211 + $0x48] sm:$0xff] %v607
      %660 = vst [vmem:[%s211 + $0x50] sm:$0xff] %v612
      %661 = vst [vmem:[%s211 + $0x58] sm:$0xff] %v615
      %662 = vst [vmem:[%s211 + $0x60] sm:$0xff] %v620
      %663 = vst [vmem:[%s211 + $0x68] sm:$0xff] %v623
      %664 = vst [vmem:[%s211 + $0x70] sm:$0xff] %v628
      %665 = vst [vmem:[%s211 + $0x78] sm:$0xff] %v631
      %p666 = scmp.lt.s32.totalorder %s15, 1
      %s667 = scalar_select %p666, %s15, 1
      %s668 = smul.addr %s667, 16
      %s669 = smul.addr %s668, 8
      %s670 = scalar_lea.vmem %s4, %s669
      // Predicated region
      $region41: #{mvge2_forward.7} parent=35 // pred_check
        %p671 = pneg %p127
      $region42: #{mvge2_forward.7} parent=35 // pred_check_branch
        %673 = sbr.rel (%p671) target = $region44
      $region43: #{mvge2_forward.7} parent=35 // pred_region
        _
      $region44: #{mvge2_forward.7} parent=35 // pred_fallthru
        _
    $region36: #{mvge2_forward.7} parent=5 // pred_fallthru
      _
    %p674 = scmp.le.s32.totalorder 2, %s10
    // Predicated region
    $region45: #{mvge2_forward.7} parent=5 // pred_check
      %p675 = pneg %p674
    $region46: #{mvge2_forward.7} parent=5 // pred_check_branch
      %677 = sbr.rel (%p675) target = $region48
    $region47: #{mvge2_forward.7} parent=5 // pred_region
      %s678 = ssub.s32 %s10, 2
      // Predicated region
      $region49: #{mvge2_forward.7} parent=47 // pred_check
        %p679 = pneg %p133
      $region50: #{mvge2_forward.7} parent=47 // pred_check_branch
        %681 = sbr.rel (%p679) target = $region52
      $region51: #{mvge2_forward.7} parent=47 // pred_region
        %p682 = scmp.lt.s32.totalorder %s16, 1
        %s683 = scalar_select %p682, %s16, 1
        %s684 = smul.addr %s683, 16
        %s685 = smul.addr %s684, 8
        %s686 = scalar_lea.vmem %s4, %s685
      $region52: #{mvge2_forward.7} parent=47 // pred_fallthru
        _
    $region48: #{mvge2_forward.7} parent=5 // pred_fallthru
      _
  $region6: #{mvge2_forward.7} parent=0 // loop_footer
    %s14 = sadd.s32 1, %s10
  $region7: #{mvge2_forward.7} parent=0 // loop_footer_branch
    %9 = sbr.rel target = $region3
  $region8: #{mvge2_forward.7} parent=0 // loop_exit
    _

// kernel: mvge2_forward.5
$region0: #{mvge2_forward.5}
  #allocation0 [shape = 'u32[]', space=smem, size = 0x4, offset = 0x4, fixed_abs, tag = 'smem constant byte address 0x4 - core index']
  #allocation1 [shape = 'u32[144,128]{1,0:T(1,128)}', space=vmem, size = 0x12000, scoped, tag = 'internal scratch']
  %s0 = inlined_call_operand.vmem [shape: f32[128,128], index: 0, kind: input, shape index: {}]
  %s1 = inlined_call_operand.vmem [shape: f32[128,128], index: 1, kind: input, shape index: {}]
  %s2 = inlined_call_operand.vmem [shape: f32[1,128], index: 2, kind: input, shape index: {}]
  %s3 = inlined_call_operand.vmem [shape: f32[128,128], index: 3, kind: output, shape index: {}]
  %s4 = sld [smem:[#allocation0]]
  $region22: #{mvge2_forward.5} parent=0
    _
  %s6 = ssub.s32 1, %s4
  %s7 = scalar_select 0, %s6, %s4
  // Predicated region
  $region2: #{mvge2_forward.5} parent=0 // pred_check
    _
  $region3: #{mvge2_forward.5} parent=0 // pred_check_branch
    %9 = sbr.rel (0) target = $region5
  $region4: #{mvge2_forward.5} parent=0 // pred_region
    _
  $region5: #{mvge2_forward.5} parent=0 // pred_fallthru
    _
  // Predicated region
  $region6: #{mvge2_forward.5} parent=0 // pred_check
    _
  $region7: #{mvge2_forward.5} parent=0 // pred_check_branch
    %11 = sbr.rel (0) target = $region9
  $region8: #{mvge2_forward.5} parent=0 // pred_region
    _
  $region9: #{mvge2_forward.5} parent=0 // pred_fallthru
    _
  // Predicated region
  $region10: #{mvge2_forward.5} parent=0 // pred_check
    _
  $region11: #{mvge2_forward.5} parent=0 // pred_check_branch
    %13 = sbr.rel (0) target = $region13
  $region12: #{mvge2_forward.5} parent=0 // pred_region
    _
  $region13: #{mvge2_forward.5} parent=0 // pred_fallthru
    _
  %v14 = vld [vmem:[%s0] sm:$0xff]
  %v15 = vld [vmem:[%s0 + $0x8] sm:$0xff]
  %v16 = vld [vmem:[%s0 + $0x10] sm:$0xff]
  %v17 = vld [vmem:[%s0 + $0x18] sm:$0xff]
  %v18 = vld [vmem:[%s0 + $0x20] sm:$0xff]
  %v19 = vld [vmem:[%s0 + $0x28] sm:$0xff]
  %v20 = vld [vmem:[%s0 + $0x30] sm:$0xff]
  %v21 = vld [vmem:[%s0 + $0x38] sm:$0xff]
  %v22 = vld [vmem:[%s0 + $0x40] sm:$0xff]
  %v23 = vld [vmem:[%s0 + $0x48] sm:$0xff]
  %v24 = vld [vmem:[%s0 + $0x50] sm:$0xff]
  %v25 = vld [vmem:[%s0 + $0x58] sm:$0xff]
  %v26 = vld [vmem:[%s0 + $0x60] sm:$0xff]
  %v27 = vld [vmem:[%s0 + $0x68] sm:$0xff]
  %v28 = vld [vmem:[%s0 + $0x70] sm:$0xff]
  %v29 = vld [vmem:[%s0 + $0x78] sm:$0xff]
  %v30 = vld [vmem:[%s1] sm:$0xff]
  %v31 = vld [vmem:[%s1 + $0x8] sm:$0xff]
  %v32 = vld [vmem:[%s1 + $0x10] sm:$0xff]
  %v33 = vld [vmem:[%s1 + $0x18] sm:$0xff]
  %v34 = vld [vmem:[%s1 + $0x20] sm:$0xff]
  %v35 = vld [vmem:[%s1 + $0x28] sm:$0xff]
  %v36 = vld [vmem:[%s1 + $0x30] sm:$0xff]
  %v37 = vld [vmem:[%s1 + $0x38] sm:$0xff]
  %v38 = vld [vmem:[%s1 + $0x40] sm:$0xff]
  %v39 = vld [vmem:[%s1 + $0x48] sm:$0xff]
  %v40 = vld [vmem:[%s1 + $0x50] sm:$0xff]
  %v41 = vld [vmem:[%s1 + $0x58] sm:$0xff]
  %v42 = vld [vmem:[%s1 + $0x60] sm:$0xff]
  %v43 = vld [vmem:[%s1 + $0x68] sm:$0xff]
  %v44 = vld [vmem:[%s1 + $0x70] sm:$0xff]
  %v45 = vld [vmem:[%s1 + $0x78] sm:$0xff]
  %v46 = vld [vmem:[%s2] sm:$0x1]
  %v48 = vlaneseq
  %v49 = vshrl.u32 %v48, 7
  %v50 = vsub.s32 0, %v49
  %v51 = vrot.slane %v46, %v50
  %53 = vmatprep.subr.mxu0 0.0
  %54 = vmatpush1.msra.mxu0 %v30
  %55 = vmatprep.subr.mxu0 0.0
  %56 = vmatpush1.msra.mxu0 %v31
  %57 = vmatprep.subr.mxu0 0.0
  %58 = vmatpush1.msra.mxu0 %v32
  %59 = vmatprep.subr.mxu0 0.0
  %60 = vmatpush1.msra.mxu0 %v33
  %61 = vmatprep.subr.mxu0 0.0
  %62 = vmatpush1.msra.mxu0 %v34
  %63 = vmatprep.subr.mxu0 0.0
  %64 = vmatpush1.msra.mxu0 %v35
  %65 = vmatprep.subr.mxu0 0.0
  %66 = vmatpush1.msra.mxu0 %v36
  %67 = vmatprep.subr.mxu0 0.0
  %68 = vmatpush1.msra.mxu0 %v37
  %69 = vmatprep.subr.mxu0 0.0
  %70 = vmatpush1.msra.mxu0 %v38
  %71 = vmatprep.subr.mxu0 0.0
  %72 = vmatpush1.msra.mxu0 %v39
  %73 = vmatprep.subr.mxu0 0.0
  %74 = vmatpush1.msra.mxu0 %v40
  %75 = vmatprep.subr.mxu0 0.0
  %76 = vmatpush1.msra.mxu0 %v41
  %77 = vmatprep.subr.mxu0 0.0
  %78 = vmatpush1.msra.mxu0 %v42
  %79 = vmatprep.subr.mxu0 0.0
  %80 = vmatpush1.msra.mxu0 %v43
  %81 = vmatprep.subr.mxu0 0.0
  %82 = vmatpush1.msra.mxu0 %v44
  %83 = vmatprep.subr.mxu0 0.0
  %84 = vmatpush1.msra.mxu0 %v45
  %85 = vmatprep.subr.mxu0 0.0
  %86 = vmatpush1.msra.mxu0 0.0
  %87 = vmatprep.subr.mxu0 0.0
  %88 = vmatpush1.msra.mxu0 0.0
  %89 = vmatprep.subr.mxu0 0.0
  %90 = vmatpush1.msra.mxu0 0.0
  %91 = vmatprep.subr.mxu0 0.0
  %92 = vmatpush1.msra.mxu0 0.0
  %93 = vmatprep.subr.mxu0 0.0
  %94 = vmatpush1.msra.mxu0 0.0
  %95 = vmatprep.subr.mxu0 0.0
  %96 = vmatpush1.msra.mxu0 0.0
  %97 = vmatprep.subr.mxu0 0.0
  %98 = vmatpush1.msra.mxu0 0.0
  %99 = vmatprep.subr.mxu0 0.0
  %100 = vmatpush1.msra.mxu0 0.0
  %101 = vmatprep.subr.mxu0 0.0
  %102 = vmatpush1.msra.mxu0 0.0
  %103 = vmatprep.subr.mxu0 0.0
  %104 = vmatpush1.msra.mxu0 0.0
  %105 = vmatprep.subr.mxu0 0.0
  %106 = vmatpush1.msra.mxu0 0.0
  %107 = vmatprep.subr.mxu0 0.0
  %108 = vmatpush1.msra.mxu0 0.0
  %109 = vmatprep.subr.mxu0 0.0
  %110 = vmatpush1.msra.mxu0 0.0
  %111 = vmatprep.subr.mxu0 0.0
  %112 = vmatpush1.msra.mxu0 0.0
  %113 = vmatprep.subr.mxu0 0.0
  %114 = vmatpush1.msra.mxu0 0.0
  %115 = vmatprep.subr.mxu0 0.0
  %116 = vmatpush1.msra.mxu0 0.0
  %117 = vmatprep.mubr.f32.mxu0 0.0
  %118 = vmatmul.mubr.f32.gmra.mrb[0].mxu0 %v14
  %v119 = vpop.f32.mrb[0].mxu0
  %v120 = vadd.f32 %v51, %v119
  %v121 = vpop.f32.mrb[0].mxu0
  %122 = vmatprep.mubr.f32.mxu0 0.0
  %123 = vmatmul.mubr.f32.gmra.mrb[0].mxu0 %v15
  %v124 = vpop.f32.mrb[0].mxu0
  %v125 = vadd.f32 %v51, %v124
  %v126 = vpop.f32.mrb[0].mxu0
  %127 = vmatprep.mubr.f32.mxu0 0.0
  %128 = vmatmul.mubr.f32.gmra.mrb[0].mxu0 %v16
  %v129 = vpop.f32.mrb[0].mxu0
  %v130 = vadd.f32 %v51, %v129
  %v131 = vpop.f32.mrb[0].mxu0
  %132 = vmatprep.mubr.f32.mxu0 0.0
  %133 = vmatmul.mubr.f32.gmra.mrb[0].mxu0 %v17
  %v134 = vpop.f32.mrb[0].mxu0
  %v135 = vadd.f32 %v51, %v134
  %v136 = vpop.f32.mrb[0].mxu0
  %137 = vmatprep.mubr.f32.mxu0 0.0
  %138 = vmatmul.mubr.f32.gmra.mrb[0].mxu0 %v18
  %v139 = vpop.f32.mrb[0].mxu0
  %v140 = vadd.f32 %v51, %v139
  %v141 = vpop.f32.mrb[0].mxu0
  %142 = vmatprep.mubr.f32.mxu0 0.0
  %143 = vmatmul.mubr.f32.gmra.mrb[0].mxu0 %v19
  %v144 = vpop.f32.mrb[0].mxu0
  %v145 = vadd.f32 %v51, %v144
  %v146 = vpop.f32.mrb[0].mxu0
  %147 = vmatprep.mubr.f32.mxu0 0.0
  %148 = vmatmul.mubr.f32.gmra.mrb[0].mxu0 %v20
  %v149 = vpop.f32.mrb[0].mxu0
  %v150 = vadd.f32 %v51, %v149
  %v151 = vpop.f32.mrb[0].mxu0
  %152 = vmatprep.mubr.f32.mxu0 0.0
  %153 = vmatmul.mubr.f32.gmra.mrb[0].mxu0 %v21
  %v154 = vpop.f32.mrb[0].mxu0
  %v155 = vadd.f32 %v51, %v154
  %v156 = vpop.f32.mrb[0].mxu0
  %157 = vmatprep.mubr.f32.mxu0 0.0
  %158 = vmatmul.mubr.f32.gmra.mrb[0].mxu0 %v22
  %v159 = vpop.f32.mrb[0].mxu0
  %v160 = vadd.f32 %v51, %v159
  %v161 = vpop.f32.mrb[0].mxu0
  %162 = vmatprep.mubr.f32.mxu0 0.0
  %163 = vmatmul.mubr.f32.gmra.mrb[0].mxu0 %v23
  %v164 = vpop.f32.mrb[0].mxu0
  %v165 = vadd.f32 %v51, %v164
  %v166 = vpop.f32.mrb[0].mxu0
  %167 = vmatprep.mubr.f32.mxu0 0.0
  %168 = vmatmul.mubr.f32.gmra.mrb[0].mxu0 %v24
  %v169 = vpop.f32.mrb[0].mxu0
  %v170 = vadd.f32 %v51, %v169
  %v171 = vpop.f32.mrb[0].mxu0
  %172 = vmatprep.mubr.f32.mxu0 0.0
  %173 = vmatmul.mubr.f32.gmra.mrb[0].mxu0 %v25
  %v174 = vpop.f32.mrb[0].mxu0
  %v175 = vadd.f32 %v51, %v174
  %v176 = vpop.f32.mrb[0].mxu0
  %177 = vmatprep.mubr.f32.mxu0 0.0
  %178 = vmatmul.mubr.f32.gmra.mrb[0].mxu0 %v26
  %v179 = vpop.f32.mrb[0].mxu0
  %v180 = vadd.f32 %v51, %v179
  %v181 = vpop.f32.mrb[0].mxu0
  %182 = vmatprep.mubr.f32.mxu0 0.0
  %183 = vmatmul.mubr.f32.gmra.mrb[0].mxu0 %v27
  %v184 = vpop.f32.mrb[0].mxu0
  %v185 = vadd.f32 %v51, %v184
  %v186 = vpop.f32.mrb[0].mxu0
  %187 = vmatprep.mubr.f32.mxu0 0.0
  %188 = vmatmul.mubr.f32.gmra.mrb[0].mxu0 %v28
  %v189 = vpop.f32.mrb[0].mxu0
  %v190 = vadd.f32 %v51, %v189
  %v191 = vpop.f32.mrb[0].mxu0
  %192 = vmatprep.mubr.f32.mxu0 0.0
  %193 = vmatmul.mubr.f32.gmra.mrb[0].mxu0 %v29
  %v194 = vpop.f32.mrb[0].mxu0
  %v195 = vadd.f32 %v51, %v194
  %v196 = vpop.f32.mrb[0].mxu0
  %197 = vdwg.mxu0
  %v198 = vmax.f32 %v120, 0.0
  %v199 = vmax.f32 %v125, 0.0
  %v200 = vmax.f32 %v130, 0.0
  %v201 = vmax.f32 %v135, 0.0
  %v202 = vmax.f32 %v140, 0.0
  %v203 = vmax.f32 %v145, 0.0
  %v204 = vmax.f32 %v150, 0.0
  %v205 = vmax.f32 %v155, 0.0
  %v206 = vmax.f32 %v160, 0.0
  %v207 = vmax.f32 %v165, 0.0
  %v208 = vmax.f32 %v170, 0.0
  %v209 = vmax.f32 %v175, 0.0
  %v210 = vmax.f32 %v180, 0.0
  %v211 = vmax.f32 %v185, 0.0
  %v212 = vmax.f32 %v190, 0.0
  %v213 = vmax.f32 %v195, 0.0
  %214 = vst [vmem:[%s3] sm:$0xff] %v198
  %215 = vst [vmem:[%s3 + $0x8] sm:$0xff] %v199
  %216 = vst [vmem:[%s3 + $0x10] sm:$0xff] %v200
  %217 = vst [vmem:[%s3 + $0x18] sm:$0xff] %v201
  %218 = vst [vmem:[%s3 + $0x20] sm:$0xff] %v202
  %219 = vst [vmem:[%s3 + $0x28] sm:$0xff] %v203
  %220 = vst [vmem:[%s3 + $0x30] sm:$0xff] %v204
  %221 = vst [vmem:[%s3 + $0x38] sm:$0xff] %v205
  %222 = vst [vmem:[%s3 + $0x40] sm:$0xff] %v206
  %223 = vst [vmem:[%s3 + $0x48] sm:$0xff] %v207
  %224 = vst [vmem:[%s3 + $0x50] sm:$0xff] %v208
  %225 = vst [vmem:[%s3 + $0x58] sm:$0xff] %v209
  %226 = vst [vmem:[%s3 + $0x60] sm:$0xff] %v210
  %227 = vst [vmem:[%s3 + $0x68] sm:$0xff] %v211
  %228 = vst [vmem:[%s3 + $0x70] sm:$0xff] %v212
  %229 = vst [vmem:[%s3 + $0x78] sm:$0xff] %v213
  // Predicated region
  $region14: #{mvge2_forward.5} parent=0 // pred_check
    _
  $region15: #{mvge2_forward.5} parent=0 // pred_check_branch
    %231 = sbr.rel (0) target = $region17
  $region16: #{mvge2_forward.5} parent=0 // pred_region
    _
  $region17: #{mvge2_forward.5} parent=0 // pred_fallthru
    _
  // Predicated region
  $region18: #{mvge2_forward.5} parent=0 // pred_check
    _
  $region19: #{mvge2_forward.5} parent=0 // pred_check_branch
    %233 = sbr.rel (0) target = $region21
  $region20: #{mvge2_forward.5} parent=0 // pred_region
    _
  $region21: #{mvge2_forward.5} parent=0 // pred_fallthru
    _

// kernel: mvge2_forward.9
$region0: #{mvge2_forward.9}
  #allocation0 [shape = 'u32[]', space=smem, size = 0x4, offset = 0x4, fixed_abs, tag = 'smem constant byte address 0x4 - core index']
  #allocation1 [shape = 'u32[144,128]{1,0:T(1,128)}', space=vmem, size = 0x12000, scoped, tag = 'internal scratch']
  %s0 = inlined_call_operand.vmem [shape: f32[128,128], index: 0, kind: input, shape index: {}]
  %s1 = inlined_call_operand.vmem [shape: f32[128,128], index: 1, kind: output, shape index: {}]
  %s2 = sld [smem:[#allocation0]]
  $region14: #{mvge2_forward.9} parent=0
    _
  %s4 = ssub.s32 1, %s2
  %s5 = scalar_select 0, %s4, %s2
  // Predicated region
  $region2: #{mvge2_forward.9} parent=0 // pred_check
    _
  $region3: #{mvge2_forward.9} parent=0 // pred_check_branch
    %7 = sbr.rel (0) target = $region5
  $region4: #{mvge2_forward.9} parent=0 // pred_region
    _
  $region5: #{mvge2_forward.9} parent=0 // pred_fallthru
    _
  %v8 = vld [vmem:[%s0] sm:$0xff]
  %v9 = vld [vmem:[%s0 + $0x8] sm:$0xff]
  %v10 = vld [vmem:[%s0 + $0x10] sm:$0xff]
  %v11 = vld [vmem:[%s0 + $0x18] sm:$0xff]
  %v12 = vld [vmem:[%s0 + $0x20] sm:$0xff]
  %v13 = vld [vmem:[%s0 + $0x28] sm:$0xff]
  %v14 = vld [vmem:[%s0 + $0x30] sm:$0xff]
  %v15 = vld [vmem:[%s0 + $0x38] sm:$0xff]
  %v16 = vld [vmem:[%s0 + $0x40] sm:$0xff]
  %v17 = vld [vmem:[%s0 + $0x48] sm:$0xff]
  %v18 = vld [vmem:[%s0 + $0x50] sm:$0xff]
  %v19 = vld [vmem:[%s0 + $0x58] sm:$0xff]
  %v20 = vld [vmem:[%s0 + $0x60] sm:$0xff]
  %v21 = vld [vmem:[%s0 + $0x68] sm:$0xff]
  %v22 = vld [vmem:[%s0 + $0x70] sm:$0xff]
  %v23 = vld [vmem:[%s0 + $0x78] sm:$0xff]
  %24 = vmatprep.subr.mxu0 0.0
  %25 = vmatpush1.xpose.msra.mxu0 %v8
  %26 = vmatprep.subr.mxu0 0.0
  %27 = vmatpush1.xpose.msra.mxu0 %v9
  %28 = vmatprep.subr.mxu0 0.0
  %29 = vmatpush1.xpose.msra.mxu0 %v10
  %30 = vmatprep.subr.mxu0 0.0
  %31 = vmatpush1.xpose.msra.mxu0 %v11
  %32 = vmatprep.subr.mxu0 0.0
  %33 = vmatpush1.xpose.msra.mxu0 %v12
  %34 = vmatprep.subr.mxu0 0.0
  %35 = vmatpush1.xpose.msra.mxu0 %v13
  %36 = vmatprep.subr.mxu0 0.0
  %37 = vmatpush1.xpose.msra.mxu0 %v14
  %38 = vmatprep.subr.mxu0 0.0
  %39 = vmatpush1.xpose.msra.mxu0 %v15
  %40 = vmatprep.subr.mxu0 0.0
  %41 = vmatpush1.xpose.msra.mxu0 %v16
  %42 = vmatprep.subr.mxu0 0.0
  %43 = vmatpush1.xpose.msra.mxu0 %v17
  %44 = vmatprep.subr.mxu0 0.0
  %45 = vmatpush1.xpose.msra.mxu0 %v18
  %46 = vmatprep.subr.mxu0 0.0
  %47 = vmatpush1.xpose.msra.mxu0 %v19
  %48 = vmatprep.subr.mxu0 0.0
  %49 = vmatpush1.xpose.msra.mxu0 %v20
  %50 = vmatprep.subr.mxu0 0.0
  %51 = vmatpush1.xpose.msra.mxu0 %v21
  %52 = vmatprep.subr.mxu0 0.0
  %53 = vmatpush1.xpose.msra.mxu0 %v22
  %54 = vmatprep.subr.mxu0 0.0
  %55 = vmatpush1.xpose.msra.mxu0 %v23
  %56 = vmatprep.subr.mxu0 0.0
  %57 = vmatpush1.xpose.msra.mxu0 0.0
  %58 = vmatprep.subr.mxu0 0.0
  %59 = vmatpush1.xpose.msra.mxu0 0.0
  %60 = vmatprep.subr.mxu0 0.0
  %61 = vmatpush1.xpose.msra.mxu0 0.0
  %62 = vmatprep.subr.mxu0 0.0
  %63 = vmatpush1.xpose.msra.mxu0 0.0
  %64 = vmatprep.subr.mxu0 0.0
  %65 = vmatpush1.xpose.msra.mxu0 0.0
  %66 = vmatprep.subr.mxu0 0.0
  %67 = vmatpush1.xpose.msra.mxu0 0.0
  %68 = vmatprep.subr.mxu0 0.0
  %69 = vmatpush1.xpose.msra.mxu0 0.0
  %70 = vmatprep.subr.mxu0 0.0
  %71 = vmatpush1.xpose.msra.mxu0 0.0
  %72 = vmatprep.subr.mxu0 0.0
  %73 = vmatpush1.xpose.msra.mxu0 0.0
  %74 = vmatprep.subr.mxu0 0.0
  %75 = vmatpush1.xpose.msra.mxu0 0.0
  %76 = vmatprep.subr.mxu0 0.0
  %77 = vmatpush1.xpose.msra.mxu0 0.0
  %78 = vmatprep.subr.mxu0 0.0
  %79 = vmatpush1.xpose.msra.mxu0 0.0
  %80 = vmatprep.subr.mxu0 0.0
  %81 = vmatpush1.xpose.msra.mxu0 0.0
  %82 = vmatprep.subr.mxu0 0.0
  %83 = vmatpush1.xpose.msra.mxu0 0.0
  %84 = vmatprep.subr.mxu0 0.0
  %85 = vmatpush1.xpose.msra.mxu0 0.0
  %86 = vmatprep.subr.mxu0 0.0
  %87 = vmatpush1.xpose.msra.mxu0 0.0
  %88 = vmatprep.mubr.f32.mxu0 0.0
  %89 = vmatmul.mubr.f32.gmra.mrb[0].mxu0 %v8
  %v90 = vpop.f32.mrb[0].mxu0
  %v91 = vadd.f32 0.0, %v90
  %v92 = vpop.f32.mrb[0].mxu0
  %93 = vmatprep.mubr.f32.mxu0 0.0
  %94 = vmatmul.mubr.f32.gmra.mrb[0].mxu0 %v9
  %v95 = vpop.f32.mrb[0].mxu0
  %v96 = vadd.f32 0.0, %v95
  %v97 = vpop.f32.mrb[0].mxu0
  %98 = vmatprep.mubr.f32.mxu0 0.0
  %99 = vmatmul.mubr.f32.gmra.mrb[0].mxu0 %v10
  %v100 = vpop.f32.mrb[0].mxu0
  %v101 = vadd.f32 0.0, %v100
  %v102 = vpop.f32.mrb[0].mxu0
  %103 = vmatprep.mubr.f32.mxu0 0.0
  %104 = vmatmul.mubr.f32.gmra.mrb[0].mxu0 %v11
  %v105 = vpop.f32.mrb[0].mxu0
  %v106 = vadd.f32 0.0, %v105
  %v107 = vpop.f32.mrb[0].mxu0
  %108 = vmatprep.mubr.f32.mxu0 0.0
  %109 = vmatmul.mubr.f32.gmra.mrb[0].mxu0 %v12
  %v110 = vpop.f32.mrb[0].mxu0
  %v111 = vadd.f32 0.0, %v110
  %v112 = vpop.f32.mrb[0].mxu0
  %113 = vmatprep.mubr.f32.mxu0 0.0
  %114 = vmatmul.mubr.f32.gmra.mrb[0].mxu0 %v13
  %v115 = vpop.f32.mrb[0].mxu0
  %v116 = vadd.f32 0.0, %v115
  %v117 = vpop.f32.mrb[0].mxu0
  %118 = vmatprep.mubr.f32.mxu0 0.0
  %119 = vmatmul.mubr.f32.gmra.mrb[0].mxu0 %v14
  %v120 = vpop.f32.mrb[0].mxu0
  %v121 = vadd.f32 0.0, %v120
  %v122 = vpop.f32.mrb[0].mxu0
  %123 = vmatprep.mubr.f32.mxu0 0.0
  %124 = vmatmul.mubr.f32.gmra.mrb[0].mxu0 %v15
  %v125 = vpop.f32.mrb[0].mxu0
  %v126 = vadd.f32 0.0, %v125
  %v127 = vpop.f32.mrb[0].mxu0
  %128 = vmatprep.mubr.f32.mxu0 0.0
  %129 = vmatmul.mubr.f32.gmra.mrb[0].mxu0 %v16
  %v130 = vpop.f32.mrb[0].mxu0
  %v131 = vadd.f32 0.0, %v130
  %v132 = vpop.f32.mrb[0].mxu0
  %133 = vmatprep.mubr.f32.mxu0 0.0
  %134 = vmatmul.mubr.f32.gmra.mrb[0].mxu0 %v17
  %v135 = vpop.f32.mrb[0].mxu0
  %v136 = vadd.f32 0.0, %v135
  %v137 = vpop.f32.mrb[0].mxu0
  %138 = vmatprep.mubr.f32.mxu0 0.0
  %139 = vmatmul.mubr.f32.gmra.mrb[0].mxu0 %v18
  %v140 = vpop.f32.mrb[0].mxu0
  %v141 = vadd.f32 0.0, %v140
  %v142 = vpop.f32.mrb[0].mxu0
  %143 = vmatprep.mubr.f32.mxu0 0.0
  %144 = vmatmul.mubr.f32.gmra.mrb[0].mxu0 %v19
  %v145 = vpop.f32.mrb[0].mxu0
  %v146 = vadd.f32 0.0, %v145
  %v147 = vpop.f32.mrb[0].mxu0
  %148 = vmatprep.mubr.f32.mxu0 0.0
  %149 = vmatmul.mubr.f32.gmra.mrb[0].mxu0 %v20
  %v150 = vpop.f32.mrb[0].mxu0
  %v151 = vadd.f32 0.0, %v150
  %v152 = vpop.f32.mrb[0].mxu0
  %153 = vmatprep.mubr.f32.mxu0 0.0
  %154 = vmatmul.mubr.f32.gmra.mrb[0].mxu0 %v21
  %v155 = vpop.f32.mrb[0].mxu0
  %v156 = vadd.f32 0.0, %v155
  %v157 = vpop.f32.mrb[0].mxu0
  %158 = vmatprep.mubr.f32.mxu0 0.0
  %159 = vmatmul.mubr.f32.gmra.mrb[0].mxu0 %v22
  %v160 = vpop.f32.mrb[0].mxu0
  %v161 = vadd.f32 0.0, %v160
  %v162 = vpop.f32.mrb[0].mxu0
  %163 = vmatprep.mubr.f32.mxu0 0.0
  %164 = vmatmul.mubr.f32.gmra.mrb[0].mxu0 %v23
  %v165 = vpop.f32.mrb[0].mxu0
  %v166 = vadd.f32 0.0, %v165
  %v167 = vpop.f32.mrb[0].mxu0
  %168 = vdwg.mxu0
  %v169 = vxor.u32 %v91, 2147483648
  %v170 = vxor.u32 %v96, 2147483648
  %v171 = vxor.u32 %v101, 2147483648
  %v172 = vxor.u32 %v106, 2147483648
  %v173 = vxor.u32 %v111, 2147483648
  %v174 = vxor.u32 %v116, 2147483648
  %v175 = vxor.u32 %v121, 2147483648
  %v176 = vxor.u32 %v126, 2147483648
  %v177 = vxor.u32 %v131, 2147483648
  %v178 = vxor.u32 %v136, 2147483648
  %v179 = vxor.u32 %v141, 2147483648
  %v180 = vxor.u32 %v146, 2147483648
  %v181 = vxor.u32 %v151, 2147483648
  %v182 = vxor.u32 %v156, 2147483648
  %v183 = vxor.u32 %v161, 2147483648
  %v184 = vxor.u32 %v166, 2147483648
  %v185 = vmul.f32 %v169, 1.442695
  %v186 = vpow.pop %v185
  %v187 = vmul.f32 %v170, 1.442695
  %v188 = vpow.pop %v187
  %v189 = vmul.f32 %v171, 1.442695
  %v190 = vpow.pop %v189
  %v191 = vmul.f32 %v172, 1.442695
  %v192 = vpow.pop %v191
  %v193 = vmul.f32 %v173, 1.442695
  %v194 = vpow.pop %v193
  %v195 = vmul.f32 %v174, 1.442695
  %v196 = vpow.pop %v195
  %v197 = vmul.f32 %v175, 1.442695
  %v198 = vpow.pop %v197
  %v199 = vmul.f32 %v176, 1.442695
  %v200 = vpow.pop %v199
  %v201 = vmul.f32 %v177, 1.442695
  %v202 = vpow.pop %v201
  %v203 = vmul.f32 %v178, 1.442695
  %v204 = vpow.pop %v203
  %v205 = vmul.f32 %v179, 1.442695
  %v206 = vpow.pop %v205
  %v207 = vmul.f32 %v180, 1.442695
  %v208 = vpow.pop %v207
  %v209 = vmul.f32 %v181, 1.442695
  %v210 = vpow.pop %v209
  %v211 = vmul.f32 %v182, 1.442695
  %v212 = vpow.pop %v211
  %v213 = vmul.f32 %v183, 1.442695
  %v214 = vpow.pop %v213
  %v215 = vmul.f32 %v184, 1.442695
  %v216 = vpow.pop %v215
  %v217 = vadd.f32 %v186, 1.0
  %v218 = vadd.f32 %v188, 1.0
  %v219 = vadd.f32 %v190, 1.0
  %v220 = vadd.f32 %v192, 1.0
  %v221 = vadd.f32 %v194, 1.0
  %v222 = vadd.f32 %v196, 1.0
  %v223 = vadd.f32 %v198, 1.0
  %v224 = vadd.f32 %v200, 1.0
  %v225 = vadd.f32 %v202, 1.0
  %v226 = vadd.f32 %v204, 1.0
  %v227 = vadd.f32 %v206, 1.0
  %v228 = vadd.f32 %v208, 1.0
  %v229 = vadd.f32 %v210, 1.0
  %v230 = vadd.f32 %v212, 1.0
  %v231 = vadd.f32 %v214, 1.0
  %v232 = vadd.f32 %v216, 1.0
  %v233 = vrcp.pop %v217
  %v234 = vmul.f32 1.0, %v233
  %v235 = vrcp.pop %v218
  %v236 = vmul.f32 1.0, %v235
  %v237 = vrcp.pop %v219
  %v238 = vmul.f32 1.0, %v237
  %v239 = vrcp.pop %v220
  %v240 = vmul.f32 1.0, %v239
  %v241 = vrcp.pop %v221
  %v242 = vmul.f32 1.0, %v241
  %v243 = vrcp.pop %v222
  %v244 = vmul.f32 1.0, %v243
  %v245 = vrcp.pop %v223
  %v246 = vmul.f32 1.0, %v245
  %v247 = vrcp.pop %v224
  %v248 = vmul.f32 1.0, %v247
  %v249 = vrcp.pop %v225
  %v250 = vmul.f32 1.0, %v249
  %v251 = vrcp.pop %v226
  %v252 = vmul.f32 1.0, %v251
  %v253 = vrcp.pop %v227
  %v254 = vmul.f32 1.0, %v253
  %v255 = vrcp.pop %v228
  %v256 = vmul.f32 1.0, %v255
  %v257 = vrcp.pop %v229
  %v258 = vmul.f32 1.0, %v257
  %v259 = vrcp.pop %v230
  %v260 = vmul.f32 1.0, %v259
  %v261 = vrcp.pop %v231
  %v262 = vmul.f32 1.0, %v261
  %v263 = vrcp.pop %v232
  %v264 = vmul.f32 1.0, %v263
  %265 = vst [vmem:[%s1] sm:$0xff] %v234
  %266 = vst [vmem:[%s1 + $0x8] sm:$0xff] %v236
  %267 = vst [vmem:[%s1 + $0x10] sm:$0xff] %v238
  %268 = vst [vmem:[%s1 + $0x18] sm:$0xff] %v240
  %269 = vst [vmem:[%s1 + $0x20] sm:$0xff] %v242
  %270 = vst [vmem:[%s1 + $0x28] sm:$0xff] %v244
  %271 = vst [vmem:[%s1 + $0x30] sm:$0xff] %v246
  %272 = vst [vmem:[%s1 + $0x38] sm:$0xff] %v248
  %273 = vst [vmem:[%s1 + $0x40] sm:$0xff] %v250
  %274 = vst [vmem:[%s1 + $0x48] sm:$0xff] %v252
  %275 = vst [vmem:[%s1 + $0x50] sm:$0xff] %v254
  %276 = vst [vmem:[%s1 + $0x58] sm:$0xff] %v256
  %277 = vst [vmem:[%s1 + $0x60] sm:$0xff] %v258
  %278 = vst [vmem:[%s1 + $0x68] sm:$0xff] %v260
  %279 = vst [vmem:[%s1 + $0x70] sm:$0xff] %v262
  %280 = vst [vmem:[%s1 + $0x78] sm:$0xff] %v264
  // Predicated region
  $region6: #{mvge2_forward.9} parent=0 // pred_check
    _
  $region7: #{mvge2_forward.9} parent=0 // pred_check_branch
    %282 = sbr.rel (0) target = $region9
  $region8: #{mvge2_forward.9} parent=0 // pred_region
    _
  $region9: #{mvge2_forward.9} parent=0 // pred_fallthru
    _
  // Predicated region
  $region10: #{mvge2_forward.9} parent=0 // pred_check
    _
  $region11: #{mvge2_forward.9} parent=0 // pred_check_branch
    %284 = sbr.rel (0) target = $region13
  $region12: #{mvge2_forward.9} parent=0 // pred_region
    _
  $region13: #{mvge2_forward.9} parent=0 // pred_fallthru
    _

</llo_original>
